<compile_context>
chip_gen: v6e
topology: v6e:2x2x1
jax: 0.10.0
libtpu: 0.0.40
codegen_flags: <defaults>
</compile_context>

<pallas_src>
import functools
import math

import jax
import jax.numpy as jnp
from jax import lax
from jax.experimental import pallas as pl
from jax.experimental.pallas import tpu as pltpu

TAU = 2.0 * math.pi
_PI = math.pi


# ---------------------------------------------------------------------------
# atan2 built only from ops guaranteed to lower in Mosaic (mul/add/where/abs,
# EUP reciprocal).  Cephes-style range reduction + minimax polynomial (~1e-7).
# ---------------------------------------------------------------------------
def _atan_nonneg(x):
    """arctan(x) for x >= 0."""
    tan3pi8 = 2.414213562373095
    tanpi8 = 0.4142135623730951
    big = x > tan3pi8
    mid = jnp.logical_and(x > tanpi8, jnp.logical_not(big))
    # single reciprocal (EUP slot): 1/x for the big branch, 1/(x+1) otherwise
    inv = pl.reciprocal(jnp.where(big, x, x + 1.0))
    xr = jnp.where(big, -inv, jnp.where(mid, (x - 1.0) * inv, x))
    y0 = jnp.where(big, _PI / 2.0, jnp.where(mid, _PI / 4.0, 0.0))
    z = xr * xr
    p = ((((8.05374449538e-2 * z - 1.38776856032e-1) * z
           + 1.99777106478e-1) * z - 3.33329491539e-1) * z) * xr + xr
    return y0 + p


def _atan2(y, x):
    q = y * pl.reciprocal(jnp.where(x == 0.0, 1.0, x))
    t = _atan_nonneg(jnp.abs(q))
    base = jnp.where(q < 0.0, -t, t)
    res = base + jnp.where(x < 0.0, jnp.where(y >= 0.0, _PI, -_PI), 0.0)
    return jnp.where(x == 0.0,
                     jnp.where(y >= 0.0, _PI / 2.0, -_PI / 2.0), res)


# ---------------------------------------------------------------------------
# Kernel.  Channel-planar layout, (8,128)-packed pixels, per-1024px groups.
# ---------------------------------------------------------------------------
def _spin_shader_kernel(q_ref, sc_ref, n_ref, bd_ref, out_ref, *,
                        ncol, nh, nl, g, n_groups):
    # q_ref:   SMEM (4,)                 camera_orientation_conj (w, x, y, z)
    # sc_ref:  SMEM (2,)                 [degree / tau, degree / 2]
    # n_ref:   VMEM (3, rows, 128)       surface normals, channel planar
    # bd_ref:  VMEM (3, nl*g, nh*g)      block-diagonal colour tables
    # out_ref: VMEM (3, rows, 128)       shaded colours, channel planar
    qa = q_ref[0]
    qb = q_ref[1]
    qc = q_ref[2]
    qd = q_ref[3]
    s1 = sc_ref[0]          # degree / tau
    s2 = sc_ref[1]          # degree / 2

    lanes = n_ref.shape[-1]
    nx_ref = n_ref.at[0]
    ny_ref = n_ref.at[1]
    nz_ref = n_ref.at[2]
    out_refs = (out_ref.at[0], out_ref.at[1], out_ref.at[2])

    # Loop-invariant index patterns (hoisted out of the group loop).
    inv_g = 1.0 / g
    hmod = jnp.floor(
        jax.lax.broadcasted_iota(jnp.int32, (nh * g, lanes), 0)
        .astype(jnp.float32) * inv_g)                       # row k -> k // g
    lmod = jnp.floor(
        jax.lax.broadcasted_iota(jnp.int32, (nl * g, lanes), 0)
        .astype(jnp.float32) * inv_g)
    col = jax.lax.broadcasted_iota(jnp.int32, (g, nl * g), 1).astype(jnp.float32)
    row = jax.lax.broadcasted_iota(jnp.int32, (g, nl * g), 0).astype(jnp.float32)
    seg = ((col - g * jnp.floor(col * inv_g)) == row).astype(jnp.float32)

    def body(gi, carry):
        row0 = pl.multiple_of(gi * g, g)
        nx = nx_ref[pl.ds(row0, g), :]      # (g, 128) -- full vreg occupancy
        ny = ny_ref[pl.ds(row0, g), :]
        nz = nz_ref[pl.ds(row0, g), :]

        # Hamilton product value = (0, nx, ny, nz) * (qa, qb, qc, qd)
        a = -(nx * qb + ny * qc + nz * qd)
        bx = nx * qa + ny * qd - nz * qc
        by = -nx * qd + ny * qa + nz * qb
        bz = nx * qc - ny * qb + nz * qa

        s = bx * bx + by * by + bz * bz          # |bcd|^2
        a2 = a * a
        real = a2 - s
        imag = 2.0 * a * jnp.sqrt(s)
        mag = a2 + s        # == sqrt(real^2 + imag^2) exactly

        ang = _atan2(imag, real)
        v = ang * s1 + s2
        frac = v - jnp.floor(v)                  # float wrap == floor-mod
        idx_f = jnp.floor(frac * ncol)           # integral float in [0, ncol)
        hi_f = jnp.floor(idx_f * (1.0 / nl))     # exact (nl = 16)
        lo_f = idx_f - hi_f * nl

        # One-hots for the whole 1024-px group, built at full occupancy.
        # Row order k = h*g + r  (pixel-row r innermost), matching bd_ref.
        hi_rep = jnp.broadcast_to(hi_f[None, :, :],
                                  (nh, g, lanes)).reshape(nh * g, lanes)
        oh_hi = (hi_rep == hmod).astype(jnp.float32)         # (nh*g, 128)
        lo_rep = jnp.broadcast_to(lo_f[None, :, :],
                                  (nl, g, lanes)).reshape(nl * g, lanes)
        oh_lo = (lo_rep == lmod).astype(jnp.float32)         # (nl*g, 128)

        for c in range(3):
            # slab[lo*g + r, :] = cmap[hi*16 + lo, c] for this group's pixels
            slab = jnp.dot(bd_ref[c], oh_hi,
                           preferred_element_type=jnp.float32)   # (nl*g, 128)
            # segmented sum over lo (one non-zero term per pixel) on the MXU
            picked = jnp.dot(seg, slab * oh_lo,
                             preferred_element_type=jnp.float32)  # (g, 128)
            out_refs[c][pl.ds(row0, g), :] = picked * mag
        return carry

    lax.fori_loop(0, n_groups, body, 0)


# ---------------------------------------------------------------------------
# Wrapper
# ---------------------------------------------------------------------------
def spin_shader_pallas(camera_orientation_conj, surface_normals,
                       cyclic_colourmap, degree, tile_px=32768):
    cam = jnp.asarray(camera_orientation_conj, jnp.float32).reshape(4)
    deg = jnp.asarray(degree, jnp.float32).reshape(())
    scal = jnp.stack([deg / TAU, 0.5 * deg]).astype(jnp.float32)

    cmap = jnp.asarray(cyclic_colourmap, jnp.float32)
    ncol = int(cmap.shape[0])

    NL = 16                                   # lo radix (always two-level)
    G = 8                                     # pixel rows per group = 1024 px
    nh = -(-ncol // NL)                       # ceil(N / 16)
    npad = nh * NL
    cmap_pad = jnp.zeros((npad, 3), jnp.float32).at[:ncol].set(cmap)

    # Block-diagonal colour tables:
    #   bd[c][lo*G + g_r, h*G + g_k] = cmap_pad[h*16 + lo, c] * (g_r == g_k)
    tab = cmap_pad.reshape(nh, NL, 3)                         # [h, lo, c]
    eye = jnp.eye(G, dtype=jnp.float32)
    bd = jnp.einsum('hlc,gk->clghk', tab, eye).reshape(3, NL * G, nh * G)

    lead = surface_normals.shape[:-1]
    p = 1
    for d in lead:
        p *= int(d)

    group_px = G * 128                        # 1024 pixels per group
    n_groups_total = -(-p // group_px)
    cap = max(1, int(tile_px) // group_px)    # groups per grid step (target)
    n_tiles = -(-n_groups_total // cap)
    if n_tiles == 1 and n_groups_total >= 2:
        n_tiles = 2                           # keep >= 2 steps for v7x megacore
    groups_per_tile = -(-n_groups_total // n_tiles)
    n_tiles = -(-n_groups_total // groups_per_tile)
    rt = groups_per_tile * G                  # rows per tile
    p_pad = n_tiles * groups_per_tile * group_px
    r_pad = p_pad // 128

    # Channel-planar layout.  TODO(synk): this transpose (and the one on the
    # output) is an extra HBM copy forced by the (..., 3) module interface.
    n_t = jnp.asarray(surface_normals, jnp.float32).reshape(p, 3).T   # (3, P)
    if p_pad != p:
        n_t = jnp.pad(n_t, ((0, 0), (0, p_pad - p)))
    n_t = n_t.reshape(3, r_pad, 128)

    kernel = functools.partial(_spin_shader_kernel, ncol=ncol, nh=nh, nl=NL,
                               g=G, n_groups=groups_per_tile)

    # VMEM budget: double-buffered in/out blocks + resident tables + margin.
    vmem_need = 2 * (2 * 3 * rt * 128 * 4) + 2 * int(bd.size) * 4 + (8 << 20)
    vmem_limit = int(min(max(vmem_need, 16 << 20), 48 << 20))

    out_t = pl.pallas_call(
        kernel,
        out_shape=jax.ShapeDtypeStruct((3, r_pad, 128), jnp.float32),
        grid=(n_tiles,),
        in_specs=[
            pl.BlockSpec(memory_space=pltpu.MemorySpace.SMEM),   # quaternion
            pl.BlockSpec(memory_space=pltpu.MemorySpace.SMEM),   # [deg/tau, deg/2]
            pl.BlockSpec((3, rt, 128), lambda i: (0, i, 0)),      # normals tile
            pl.BlockSpec(bd.shape, lambda i: (0, 0, 0)),          # resident tables
        ],
        out_specs=pl.BlockSpec((3, rt, 128), lambda i: (0, i, 0)),
        compiler_params=pltpu.CompilerParams(
            dimension_semantics=("parallel",),
            vmem_limit_bytes=vmem_limit),
    )(cam, scal, n_t, bd)

    return out_t.reshape(3, p_pad)[:, :p].T.reshape(*lead, 3)


# ---------------------------------------------------------------------------
# Pure-JAX reference (transcription of the torch module) for a sanity check.
# ---------------------------------------------------------------------------
def spin_shader_ref(cam, normals, cmap, degree):
    qa, qb, qc, qd = cam[0], cam[1], cam[2], cam[3]
    nx, ny, nz = normals[..., 0], normals[..., 1], normals[..., 2]
    a = -(nx * qb + ny * qc + nz * qd)
    bx = nx * qa + ny * qd - nz * qc
    by = -nx * qd + ny * qa + nz * qb
    bz = nx * qc - ny * qb + nz * qa
    s = bx * bx + by * by + bz * bz
    real = a * a - s
    imag = 2.0 * a * jnp.sqrt(s)
    ncol = cmap.shape[0]
    idx = jnp.mod(
        jnp.floor((jnp.arctan2(imag, real) / TAU + 0.5) * degree * ncol)
        .astype(jnp.int32), ncol)
    mag = jnp.sqrt(real * real + imag * imag)
    return cmap[idx] * mag[..., None]


def _check(out, ref, max_bad):
    diff = jnp.abs(out - ref)
    # Pixels may disagree only if the angle lands within ~1e-6 rad of a colour
    # bin boundary (different atan2 rounding); allow a handful of such pixels.
    bad = int(jnp.sum(jnp.any(diff > 1e-3, axis=-1)))
    assert bad <= max_bad, f"kernel/reference mismatch on {bad} pixels"


if __name__ == "__main__":
    key = jax.random.PRNGKey(0)
    k1, k2 = jax.random.split(key)

    H = W = 16
    normals = jax.random.normal(k1, (H, W, 3), jnp.float32)
    normals = normals / jnp.linalg.norm(normals, axis=-1, keepdims=True)

    cam = jax.random.normal(k2, (4,), jnp.float32)
    cam = cam / jnp.linalg.norm(cam)                 # unit conjugate quaternion
    degree = 1
    max_bad = max(4, (H * W) // 128)

    # --- colourmap with N divisible by 16 ---
    ncol = 256
    t = jnp.arange(ncol, dtype=jnp.float32) / ncol
    cmap = jnp.stack([0.5 + 0.5 * jnp.cos(TAU * t),
                      0.5 + 0.5 * jnp.cos(TAU * (t + 1.0 / 3.0)),
                      0.5 + 0.5 * jnp.cos(TAU * (t + 2.0 / 3.0))], axis=-1)

    out = spin_shader_pallas(cam, normals, cmap, degree)
    out = jax.block_until_ready(out)
    assert out.shape == (H, W, 3) and out.dtype == jnp.float32
    _check(out, spin_shader_ref(cam, normals, cmap, degree), max_bad=max_bad)

    # --- colourmap with N not divisible by 16 (exercises the zero padding) ---
    ncol2 = 100
    t2 = jnp.arange(ncol2, dtype=jnp.float32) / ncol2
    cmap2 = jnp.stack([0.5 + 0.5 * jnp.cos(TAU * t2),
                       0.5 + 0.5 * jnp.cos(TAU * (t2 + 1.0 / 3.0)),
                       0.5 + 0.5 * jnp.cos(TAU * (t2 + 2.0 / 3.0))], axis=-1)
    out2 = spin_shader_pallas(cam, normals, cmap2, degree)
    out2 = jax.block_until_ready(out2)
    assert out2.shape == (H, W, 3) and out2.dtype == jnp.float32
    _check(out2, spin_shader_ref(cam, normals, cmap2, degree), max_bad=max_bad)

    print("KERNEL_OK")
</pallas_src>

<mosaic_0001>
module attributes {stable_mosaic.version = 11 : i64} {
  func.func @_spin_shader_kernel(%arg0: i32, %arg1: memref<4xf32, #tpu.memory_space<smem>>, %arg2: memref<2xf32, #tpu.memory_space<smem>>, %arg3: memref<3x8x128xf32, #tpu.memory_space<vmem>>, %arg4: memref<3x128x128xf32, #tpu.memory_space<vmem>>, %arg5: memref<3x8x128xf32, #tpu.memory_space<vmem>>) attributes {dimension_semantics = [#tpu.dimension_semantics<parallel>], iteration_bounds = array<i64: 1>, scalar_prefetch = 0 : i64, scratch_operands = 0 : i64, tpu.core_type = #tpu.core_type<tc>, window_params = [{transform_indices = @transform_0, window_bounds = array<i64: 4>}, {transform_indices = @transform_1, window_bounds = array<i64: 2>}, {transform_indices = @transform_2, window_bounds = array<i64: 3, 8, 128>}, {pipeline_mode = #tpu.pipeline_mode<synchronous>, transform_indices = @transform_3, window_bounds = array<i64: 3, 128, 128>}, {transform_indices = @transform_4, window_bounds = array<i64: 3, 8, 128>}]} {
    %c0 = arith.constant 0 : index
    %0 = memref.load %arg1[%c0] : memref<4xf32, #tpu.memory_space<smem>>
    %c1 = arith.constant 1 : index
    %1 = memref.load %arg1[%c1] : memref<4xf32, #tpu.memory_space<smem>>
    %c2 = arith.constant 2 : index
    %2 = memref.load %arg1[%c2] : memref<4xf32, #tpu.memory_space<smem>>
    %c3 = arith.constant 3 : index
    %3 = memref.load %arg1[%c3] : memref<4xf32, #tpu.memory_space<smem>>
    %c0_0 = arith.constant 0 : index
    %4 = memref.load %arg2[%c0_0] : memref<2xf32, #tpu.memory_space<smem>>
    %c1_1 = arith.constant 1 : index
    %5 = memref.load %arg2[%c1_1] : memref<2xf32, #tpu.memory_space<smem>>
    %6 = tpu.iota {dimensions = array<i32: 0>} : vector<128x128xi32>
    %7 = arith.sitofp %6 : vector<128x128xi32> to vector<128x128xf32>
    %cst = arith.constant 1.250000e-01 : f32
    %8 = vector.broadcast %cst : f32 to vector<128x128xf32>
    %9 = arith.mulf %7, %8 : vector<128x128xf32>
    %10 = math.floor %9 : vector<128x128xf32>
    %11 = tpu.iota {dimensions = array<i32: 0>} : vector<128x128xi32>
    %12 = arith.sitofp %11 : vector<128x128xi32> to vector<128x128xf32>
    %cst_2 = arith.constant 1.250000e-01 : f32
    %13 = vector.broadcast %cst_2 : f32 to vector<128x128xf32>
    %14 = arith.mulf %12, %13 : vector<128x128xf32>
    %15 = math.floor %14 : vector<128x128xf32>
    %16 = tpu.iota {dimensions = array<i32: 1>} : vector<8x128xi32>
    %17 = arith.sitofp %16 : vector<8x128xi32> to vector<8x128xf32>
    %18 = tpu.iota {dimensions = array<i32: 0>} : vector<8x128xi32>
    %19 = arith.sitofp %18 : vector<8x128xi32> to vector<8x128xf32>
    %cst_3 = arith.constant 1.250000e-01 : f32
    %20 = vector.broadcast %cst_3 : f32 to vector<8x128xf32>
    %21 = arith.mulf %17, %20 : vector<8x128xf32>
    %22 = math.floor %21 : vector<8x128xf32>
    %cst_4 = arith.constant 8.000000e+00 : f32
    %23 = vector.broadcast %cst_4 : f32 to vector<8x128xf32>
    %24 = arith.mulf %23, %22 : vector<8x128xf32>
    %25 = arith.subf %17, %24 : vector<8x128xf32>
    %26 = arith.cmpf oeq, %25, %19 : vector<8x128xf32>
    %27 = arith.extui %26 : vector<8x128xi1> to vector<8x128xi32>
    %28 = arith.sitofp %27 : vector<8x128xi32> to vector<8x128xf32>
    %c0_i32 = arith.constant 0 : i32
    %c1_i32 = arith.constant 1 : i32
    %c2_i32 = arith.constant 2 : i32
    %c0_i32_5 = arith.constant 0 : i32
    %c1_i32_6 = arith.constant 1 : i32
    %c2_i32_7 = arith.constant 2 : i32
    %c0_i32_8 = arith.constant 0 : i32
    %c8_i32 = arith.constant 8 : i32
    %29 = arith.muli %c0_i32_8, %c8_i32 : i32
    %30 = tpu.assume_multiple %29, 8 : i32
    %c0_i32_9 = arith.constant 0 : i32
    %c0_i32_10 = arith.constant 0 : i32
    %31 = tpu.memref_slice %arg3[%c0_i32, %c0_i32_9, %c0_i32_10] : memref<3x8x128xf32, #tpu.memory_space<vmem>> -> memref<1x8x128xf32, #tpu.memory_space<vmem>>
    %32 = tpu.memref_squeeze %31 : memref<1x8x128xf32, #tpu.memory_space<vmem>> -> memref<8x128xf32, #tpu.memory_space<vmem>>
    %33 = arith.index_cast %30 : i32 to index
    %c0_11 = arith.constant 0 : index
    %34 = vector.load %32[%33, %c0_11] : memref<8x128xf32, #tpu.memory_space<vmem>>, vector<8x128xf32>
    %c0_i32_12 = arith.constant 0 : i32
    %c0_i32_13 = arith.constant 0 : i32
    %35 = tpu.memref_slice %arg3[%c1_i32, %c0_i32_12, %c0_i32_13] : memref<3x8x128xf32, #tpu.memory_space<vmem>> -> memref<1x8x128xf32, #tpu.memory_space<vmem>>
    %36 = tpu.memref_squeeze %35 : memref<1x8x128xf32, #tpu.memory_space<vmem>> -> memref<8x128xf32, #tpu.memory_space<vmem>>
    %37 = arith.index_cast %30 : i32 to index
    %c0_14 = arith.constant 0 : index
    %38 = vector.load %36[%37, %c0_14] : memref<8x128xf32, #tpu.memory_space<vmem>>, vector<8x128xf32>
    %c0_i32_15 = arith.constant 0 : i32
    %c0_i32_16 = arith.constant 0 : i32
    %39 = tpu.memref_slice %arg3[%c2_i32, %c0_i32_15, %c0_i32_16] : memref<3x8x128xf32, #tpu.memory_space<vmem>> -> memref<1x8x128xf32, #tpu.memory_space<vmem>>
    %40 = tpu.memref_squeeze %39 : memref<1x8x128xf32, #tpu.memory_space<vmem>> -> memref<8x128xf32, #tpu.memory_space<vmem>>
    %41 = arith.index_cast %30 : i32 to index
    %c0_17 = arith.constant 0 : index
    %42 = vector.load %40[%41, %c0_17] : memref<8x128xf32, #tpu.memory_space<vmem>>, vector<8x128xf32>
    %43 = vector.broadcast %1 : f32 to vector<8x128xf32>
    %44 = arith.mulf %34, %43 : vector<8x128xf32>
    %45 = vector.broadcast %2 : f32 to vector<8x128xf32>
    %46 = arith.mulf %38, %45 : vector<8x128xf32>
    %47 = arith.addf %44, %46 : vector<8x128xf32>
    %48 = vector.broadcast %3 : f32 to vector<8x128xf32>
    %49 = arith.mulf %42, %48 : vector<8x128xf32>
    %50 = arith.addf %47, %49 : vector<8x128xf32>
    %cst_18 = arith.constant 0.000000e+00 : f32
    %51 = vector.broadcast %cst_18 : f32 to vector<8x128xf32>
    %52 = arith.subf %51, %50 : vector<8x128xf32>
    %53 = vector.broadcast %0 : f32 to vector<8x128xf32>
    %54 = arith.mulf %34, %53 : vector<8x128xf32>
    %55 = vector.broadcast %3 : f32 to vector<8x128xf32>
    %56 = arith.mulf %38, %55 : vector<8x128xf32>
    %57 = arith.addf %54, %56 : vector<8x128xf32>
    %58 = vector.broadcast %2 : f32 to vector<8x128xf32>
    %59 = arith.mulf %42, %58 : vector<8x128xf32>
    %60 = arith.subf %57, %59 : vector<8x128xf32>
    %cst_19 = arith.constant 0.000000e+00 : f32
    %61 = vector.broadcast %cst_19 : f32 to vector<8x128xf32>
    %62 = arith.subf %61, %34 : vector<8x128xf32>
    %63 = vector.broadcast %3 : f32 to vector<8x128xf32>
    %64 = arith.mulf %62, %63 : vector<8x128xf32>
    %65 = vector.broadcast %0 : f32 to vector<8x128xf32>
    %66 = arith.mulf %38, %65 : vector<8x128xf32>
    %67 = arith.addf %64, %66 : vector<8x128xf32>
    %68 = vector.broadcast %1 : f32 to vector<8x128xf32>
    %69 = arith.mulf %42, %68 : vector<8x128xf32>
    %70 = arith.addf %67, %69 : vector<8x128xf32>
    %71 = vector.broadcast %2 : f32 to vector<8x128xf32>
    %72 = arith.mulf %34, %71 : vector<8x128xf32>
    %73 = vector.broadcast %1 : f32 to vector<8x128xf32>
    %74 = arith.mulf %38, %73 : vector<8x128xf32>
    %75 = arith.subf %72, %74 : vector<8x128xf32>
    %76 = vector.broadcast %0 : f32 to vector<8x128xf32>
    %77 = arith.mulf %42, %76 : vector<8x128xf32>
    %78 = arith.addf %75, %77 : vector<8x128xf32>
    %79 = arith.mulf %60, %60 : vector<8x128xf32>
    %80 = arith.mulf %70, %70 : vector<8x128xf32>
    %81 = arith.addf %79, %80 : vector<8x128xf32>
    %82 = arith.mulf %78, %78 : vector<8x128xf32>
    %83 = arith.addf %81, %82 : vector<8x128xf32>
    %84 = arith.mulf %52, %52 : vector<8x128xf32>
    %85 = arith.subf %84, %83 : vector<8x128xf32>
    %cst_20 = arith.constant 2.000000e+00 : f32
    %86 = vector.broadcast %cst_20 : f32 to vector<8x128xf32>
    %87 = arith.mulf %86, %52 : vector<8x128xf32>
    %88 = math.sqrt %83 : vector<8x128xf32>
    %89 = arith.mulf %87, %88 : vector<8x128xf32>
    %90 = arith.addf %84, %83 : vector<8x128xf32>
    %cst_21 = arith.constant 0.000000e+00 : f32
    %91 = vector.broadcast %cst_21 : f32 to vector<8x128xf32>
    %92 = arith.cmpf oeq, %85, %91 : vector<8x128xf32>
    %cst_22 = arith.constant 1.000000e+00 : f32
    %93 = vector.broadcast %cst_22 : f32 to vector<8x128xf32>
    %94 = arith.select %92, %93, %85 : vector<8x128xi1>, vector<8x128xf32>
    %95 = tpu.reciprocal %94 : vector<8x128xf32> -> vector<8x128xf32>
    %96 = arith.mulf %89, %95 : vector<8x128xf32>
    %97 = math.absf %96 : vector<8x128xf32>
    %cst_23 = arith.constant 2.41421366 : f32
    %98 = vector.broadcast %cst_23 : f32 to vector<8x128xf32>
    %99 = arith.cmpf ogt, %97, %98 : vector<8x128xf32>
    %cst_24 = arith.constant 0.414213568 : f32
    %100 = vector.broadcast %cst_24 : f32 to vector<8x128xf32>
    %101 = arith.cmpf ogt, %97, %100 : vector<8x128xf32>
    %cst_25 = arith.constant dense<true> : vector<8x128xi1>
    %102 = arith.xori %99, %cst_25 : vector<8x128xi1>
    %103 = arith.andi %101, %102 : vector<8x128xi1>
    %cst_26 = arith.constant 1.000000e+00 : f32
    %104 = vector.broadcast %cst_26 : f32 to vector<8x128xf32>
    %105 = arith.addf %97, %104 : vector<8x128xf32>
    %106 = arith.select %99, %97, %105 : vector<8x128xi1>, vector<8x128xf32>
    %107 = tpu.reciprocal %106 : vector<8x128xf32> -> vector<8x128xf32>
    %cst_27 = arith.constant 0.000000e+00 : f32
    %108 = vector.broadcast %cst_27 : f32 to vector<8x128xf32>
    %109 = arith.subf %108, %107 : vector<8x128xf32>
    %cst_28 = arith.constant 1.000000e+00 : f32
    %110 = vector.broadcast %cst_28 : f32 to vector<8x128xf32>
    %111 = arith.subf %97, %110 : vector<8x128xf32>
    %112 = arith.mulf %111, %107 : vector<8x128xf32>
    %113 = arith.select %103, %112, %97 : vector<8x128xi1>, vector<8x128xf32>
    %114 = arith.select %99, %109, %113 : vector<8x128xi1>, vector<8x128xf32>
    %cst_29 = arith.constant 0.785398185 : f32
    %cst_30 = arith.constant 0.000000e+00 : f32
    %115 = vector.broadcast %cst_29 : f32 to vector<8x128xf32>
    %116 = vector.broadcast %cst_30 : f32 to vector<8x128xf32>
    %117 = arith.select %103, %115, %116 : vector<8x128xi1>, vector<8x128xf32>
    %cst_31 = arith.constant 1.57079637 : f32
    %118 = vector.broadcast %cst_31 : f32 to vector<8x128xf32>
    %119 = arith.select %99, %118, %117 : vector<8x128xi1>, vector<8x128xf32>
    %120 = arith.mulf %114, %114 : vector<8x128xf32>
    %cst_32 = arith.constant 0.0805374458 : f32
    %121 = vector.broadcast %cst_32 : f32 to vector<8x128xf32>
    %122 = arith.mulf %121, %120 : vector<8x128xf32>
    %cst_33 = arith.constant 0.138776854 : f32
    %123 = vector.broadcast %cst_33 : f32 to vector<8x128xf32>
    %124 = arith.subf %122, %123 : vector<8x128xf32>
    %125 = arith.mulf %124, %120 : vector<8x128xf32>
    %cst_34 = arith.constant 0.199777111 : f32
    %126 = vector.broadcast %cst_34 : f32 to vector<8x128xf32>
    %127 = arith.addf %125, %126 : vector<8x128xf32>
    %128 = arith.mulf %127, %120 : vector<8x128xf32>
    %cst_35 = arith.constant 0.333329499 : f32
    %129 = vector.broadcast %cst_35 : f32 to vector<8x128xf32>
    %130 = arith.subf %128, %129 : vector<8x128xf32>
    %131 = arith.mulf %130, %120 : vector<8x128xf32>
    %132 = arith.mulf %131, %114 : vector<8x128xf32>
    %133 = arith.addf %132, %114 : vector<8x128xf32>
    %134 = arith.addf %119, %133 : vector<8x128xf32>
    %cst_36 = arith.constant 0.000000e+00 : f32
    %135 = vector.broadcast %cst_36 : f32 to vector<8x128xf32>
    %136 = arith.cmpf olt, %96, %135 : vector<8x128xf32>
    %cst_37 = arith.constant 0.000000e+00 : f32
    %137 = vector.broadcast %cst_37 : f32 to vector<8x128xf32>
    %138 = arith.subf %137, %134 : vector<8x128xf32>
    %139 = arith.select %136, %138, %134 : vector<8x128xi1>, vector<8x128xf32>
    %cst_38 = arith.constant 0.000000e+00 : f32
    %140 = vector.broadcast %cst_38 : f32 to vector<8x128xf32>
    %141 = arith.cmpf olt, %85, %140 : vector<8x128xf32>
    %cst_39 = arith.constant 0.000000e+00 : f32
    %142 = vector.broadcast %cst_39 : f32 to vector<8x128xf32>
    %143 = arith.cmpf oge, %89, %142 : vector<8x128xf32>
    %cst_40 = arith.constant 3.14159274 : f32
    %cst_41 = arith.constant -3.14159274 : f32
    %144 = vector.broadcast %cst_40 : f32 to vector<8x128xf32>
    %145 = vector.broadcast %cst_41 : f32 to vector<8x128xf32>
    %146 = arith.select %143, %144, %145 : vector<8x128xi1>, vector<8x128xf32>
    %cst_42 = arith.constant 0.000000e+00 : f32
    %147 = vector.broadcast %cst_42 : f32 to vector<8x128xf32>
    %148 = arith.select %141, %146, %147 : vector<8x128xi1>, vector<8x128xf32>
    %149 = arith.addf %139, %148 : vector<8x128xf32>
    %cst_43 = arith.constant 0.000000e+00 : f32
    %150 = vector.broadcast %cst_43 : f32 to vector<8x128xf32>
    %151 = arith.cmpf oeq, %85, %150 : vector<8x128xf32>
    %cst_44 = arith.constant 0.000000e+00 : f32
    %152 = vector.broadcast %cst_44 : f32 to vector<8x128xf32>
    %153 = arith.cmpf oge, %89, %152 : vector<8x128xf32>
    %cst_45 = arith.constant 1.57079637 : f32
    %cst_46 = arith.constant -1.57079637 : f32
    %154 = vector.broadcast %cst_45 : f32 to vector<8x128xf32>
    %155 = vector.broadcast %cst_46 : f32 to vector<8x128xf32>
    %156 = arith.select %153, %154, %155 : vector<8x128xi1>, vector<8x128xf32>
    %157 = arith.select %151, %156, %149 : vector<8x128xi1>, vector<8x128xf32>
    %158 = vector.broadcast %4 : f32 to vector<8x128xf32>
    %159 = arith.mulf %157, %158 : vector<8x128xf32>
    %160 = vector.broadcast %5 : f32 to vector<8x128xf32>
    %161 = arith.addf %159, %160 : vector<8x128xf32>
    %162 = math.floor %161 : vector<8x128xf32>
    %163 = arith.subf %161, %162 : vector<8x128xf32>
    %cst_47 = arith.constant 2.560000e+02 : f32
    %164 = vector.broadcast %cst_47 : f32 to vector<8x128xf32>
    %165 = arith.mulf %163, %164 : vector<8x128xf32>
    %166 = math.floor %165 : vector<8x128xf32>
    %cst_48 = arith.constant 6.250000e-02 : f32
    %167 = vector.broadcast %cst_48 : f32 to vector<8x128xf32>
    %168 = arith.mulf %166, %167 : vector<8x128xf32>
    %169 = math.floor %168 : vector<8x128xf32>
    %cst_49 = arith.constant 1.600000e+01 : f32
    %170 = vector.broadcast %cst_49 : f32 to vector<8x128xf32>
    %171 = arith.mulf %169, %170 : vector<8x128xf32>
    %172 = arith.subf %166, %171 : vector<8x128xf32>
    %173 = vector.shape_cast %169 : vector<8x128xf32> to vector<1x8x128xf32>
    %174 = vector.shape_cast %173 : vector<1x8x128xf32> to vector<1x8x128xf32>
    %175 = vector.broadcast %174 : vector<1x8x128xf32> to vector<16x8x128xf32>
    %176 = vector.shape_cast %175 : vector<16x8x128xf32> to vector<128x128xf32>
    %177 = arith.cmpf oeq, %176, %10 : vector<128x128xf32>
    %178 = arith.extui %177 : vector<128x128xi1> to vector<128x128xi32>
    %179 = arith.sitofp %178 : vector<128x128xi32> to vector<128x128xf32>
    %180 = vector.shape_cast %172 : vector<8x128xf32> to vector<1x8x128xf32>
    %181 = vector.shape_cast %180 : vector<1x8x128xf32> to vector<1x8x128xf32>
    %182 = vector.broadcast %181 : vector<1x8x128xf32> to vector<16x8x128xf32>
    %183 = vector.shape_cast %182 : vector<16x8x128xf32> to vector<128x128xf32>
    %184 = arith.cmpf oeq, %183, %15 : vector<128x128xf32>
    %185 = arith.extui %184 : vector<128x128xi1> to vector<128x128xi32>
    %186 = arith.sitofp %185 : vector<128x128xi32> to vector<128x128xf32>
    %c0_50 = arith.constant 0 : index
    %c0_51 = arith.constant 0 : index
    %c0_52 = arith.constant 0 : index
    %187 = vector.load %arg4[%c0_50, %c0_51, %c0_52] : memref<3x128x128xf32, #tpu.memory_space<vmem>>, vector<1x128x128xf32>
    %188 = vector.shape_cast %187 : vector<1x128x128xf32> to vector<128x128xf32>
    %cst_53 = arith.constant dense<0.000000e+00> : vector<128x128xf32>
    %189 = tpu.matmul %188, %179, %cst_53 {dimension_numbers = #tpu.dot_dimension_numbers<[1], [0], [0], [1], [0, 0, 1, 1], [], []>} : vector<128x128xf32>, vector<128x128xf32>, vector<128x128xf32> -> vector<128x128xf32>
    %190 = arith.mulf %189, %186 : vector<128x128xf32>
    %cst_54 = arith.constant dense<0.000000e+00> : vector<8x128xf32>
    %191 = tpu.matmul %28, %190, %cst_54 {dimension_numbers = #tpu.dot_dimension_numbers<[1], [0], [0], [1], [0, 0, 1, 1], [], []>} : vector<8x128xf32>, vector<128x128xf32>, vector<8x128xf32> -> vector<8x128xf32>
    %192 = arith.mulf %191, %90 : vector<8x128xf32>
    %c0_i32_55 = arith.constant 0 : i32
    %c0_i32_56 = arith.constant 0 : i32
    %193 = tpu.memref_slice %arg5[%c0_i32_5, %c0_i32_55, %c0_i32_56] : memref<3x8x128xf32, #tpu.memory_space<vmem>> -> memref<1x8x128xf32, #tpu.memory_space<vmem>>
    %194 = tpu.memref_squeeze %193 : memref<1x8x128xf32, #tpu.memory_space<vmem>> -> memref<8x128xf32, #tpu.memory_space<vmem>>
    %195 = arith.index_cast %30 : i32 to index
    %c0_57 = arith.constant 0 : index
    %196 = vector.load %194[%195, %c0_57] : memref<8x128xf32, #tpu.memory_space<vmem>>, vector<8x128xf32>
    tpu.vector_store %194[%195, %c0_57], %192 {strides = array<i32>} : memref<8x128xf32, #tpu.memory_space<vmem>>, vector<8x128xf32>,
    %c1_58 = arith.constant 1 : index
    %c0_59 = arith.constant 0 : index
    %c0_60 = arith.constant 0 : index
    %197 = vector.load %arg4[%c1_58, %c0_59, %c0_60] : memref<3x128x128xf32, #tpu.memory_space<vmem>>, vector<1x128x128xf32>
    %198 = vector.shape_cast %197 : vector<1x128x128xf32> to vector<128x128xf32>
    %cst_61 = arith.constant dense<0.000000e+00> : vector<128x128xf32>
    %199 = tpu.matmul %198, %179, %cst_61 {dimension_numbers = #tpu.dot_dimension_numbers<[1], [0], [0], [1], [0, 0, 1, 1], [], []>} : vector<128x128xf32>, vector<128x128xf32>, vector<128x128xf32> -> vector<128x128xf32>
    %200 = arith.mulf %199, %186 : vector<128x128xf32>
    %cst_62 = arith.constant dense<0.000000e+00> : vector<8x128xf32>
    %201 = tpu.matmul %28, %200, %cst_62 {dimension_numbers = #tpu.dot_dimension_numbers<[1], [0], [0], [1], [0, 0, 1, 1], [], []>} : vector<8x128xf32>, vector<128x128xf32>, vector<8x128xf32> -> vector<8x128xf32>
    %202 = arith.mulf %201, %90 : vector<8x128xf32>
    %c0_i32_63 = arith.constant 0 : i32
    %c0_i32_64 = arith.constant 0 : i32
    %203 = tpu.memref_slice %arg5[%c1_i32_6, %c0_i32_63, %c0_i32_64] : memref<3x8x128xf32, #tpu.memory_space<vmem>> -> memref<1x8x128xf32, #tpu.memory_space<vmem>>
    %204 = tpu.memref_squeeze %203 : memref<1x8x128xf32, #tpu.memory_space<vmem>> -> memref<8x128xf32, #tpu.memory_space<vmem>>
    %205 = arith.index_cast %30 : i32 to index
    %c0_65 = arith.constant 0 : index
    %206 = vector.load %204[%205, %c0_65] : memref<8x128xf32, #tpu.memory_space<vmem>>, vector<8x128xf32>
    tpu.vector_store %204[%205, %c0_65], %202 {strides = array<i32>} : memref<8x128xf32, #tpu.memory_space<vmem>>, vector<8x128xf32>,
    %c2_66 = arith.constant 2 : index
    %c0_67 = arith.constant 0 : index
    %c0_68 = arith.constant 0 : index
    %207 = vector.load %arg4[%c2_66, %c0_67, %c0_68] : memref<3x128x128xf32, #tpu.memory_space<vmem>>, vector<1x128x128xf32>
    %208 = vector.shape_cast %207 : vector<1x128x128xf32> to vector<128x128xf32>
    %cst_69 = arith.constant dense<0.000000e+00> : vector<128x128xf32>
    %209 = tpu.matmul %208, %179, %cst_69 {dimension_numbers = #tpu.dot_dimension_numbers<[1], [0], [0], [1], [0, 0, 1, 1], [], []>} : vector<128x128xf32>, vector<128x128xf32>, vector<128x128xf32> -> vector<128x128xf32>
    %210 = arith.mulf %209, %186 : vector<128x128xf32>
    %cst_70 = arith.constant dense<0.000000e+00> : vector<8x128xf32>
    %211 = tpu.matmul %28, %210, %cst_70 {dimension_numbers = #tpu.dot_dimension_numbers<[1], [0], [0], [1], [0, 0, 1, 1], [], []>} : vector<8x128xf32>, vector<128x128xf32>, vector<8x128xf32> -> vector<8x128xf32>
    %212 = arith.mulf %211, %90 : vector<8x128xf32>
    %c0_i32_71 = arith.constant 0 : i32
    %c0_i32_72 = arith.constant 0 : i32
    %213 = tpu.memref_slice %arg5[%c2_i32_7, %c0_i32_71, %c0_i32_72] : memref<3x8x128xf32, #tpu.memory_space<vmem>> -> memref<1x8x128xf32, #tpu.memory_space<vmem>>
    %214 = tpu.memref_squeeze %213 : memref<1x8x128xf32, #tpu.memory_space<vmem>> -> memref<8x128xf32, #tpu.memory_space<vmem>>
    %215 = arith.index_cast %30 : i32 to index
    %c0_73 = arith.constant 0 : index
    %216 = vector.load %214[%215, %c0_73] : memref<8x128xf32, #tpu.memory_space<vmem>>, vector<8x128xf32>
    tpu.vector_store %214[%215, %c0_73], %212 {strides = array<i32>} : memref<8x128xf32, #tpu.memory_space<vmem>>, vector<8x128xf32>,
    %c1_i32_74 = arith.constant 1 : i32
    return
  }
  func.func @transform_0(%arg0: i32) -> i32 {
    %c0_i32 = arith.constant 0 : i32
    %c0_i32_0 = arith.constant 0 : i32
    return %c0_i32 : i32
  }
  func.func @transform_1(%arg0: i32) -> i32 {
    %c0_i32 = arith.constant 0 : i32
    %c0_i32_0 = arith.constant 0 : i32
    return %c0_i32 : i32
  }
  func.func @transform_2(%arg0: i32) -> (i32, i32, i32) {
    %c0_i32 = arith.constant 0 : i32
    %c0_i32_0 = arith.constant 0 : i32
    %c0_i32_1 = arith.constant 0 : i32
    return %c0_i32, %arg0, %c0_i32_0 : i32, i32, i32
  }
  func.func @transform_3(%arg0: i32) -> (i32, i32, i32) {
    %c0_i32 = arith.constant 0 : i32
    %c0_i32_0 = arith.constant 0 : i32
    %c0_i32_1 = arith.constant 0 : i32
    %c0_i32_2 = arith.constant 0 : i32
    return %c0_i32, %c0_i32_0, %c0_i32_1 : i32, i32, i32
  }
  func.func @transform_4(%arg0: i32) -> (i32, i32, i32) {
    %c0_i32 = arith.constant 0 : i32
    %c0_i32_0 = arith.constant 0 : i32
    %c0_i32_1 = arith.constant 0 : i32
    return %c0_i32, %arg0, %c0_i32_0 : i32, i32, i32
  }
}

</mosaic_0001>

<llo_original>
// kernel: tpu_custom_call.1
$region0: #{tpu_custom_call.1}
  #allocation0 [shape = 'u32[]', space=smem, size = 0x4, offset = 0x4, fixed_abs, tag = 'smem constant byte address 0x4 - core index']
  #allocation1 [shape = 'u32[144,128]{1,0:T(1,128)}', space=vmem, size = 0x12000, scoped, tag = 'internal scratch']
  %s0 = inlined_call_operand.hbm [shape: f32[4], index: 0, kind: input, shape index: {}]
  %s1 = inlined_call_operand.vmem [shape: f32[2], index: 1, kind: input, shape index: {}]
  %s2 = inlined_call_operand.hbm [shape: f32[3,8,128], index: 2, kind: input, shape index: {}]
  %s3 = inlined_call_operand.hbm [shape: f32[3,128,128], index: 3, kind: input, shape index: {}]
  %s4 = inlined_call_operand.hbm [shape: f32[3,8,128], index: 4, kind: output, shape index: {}]
  %s5 = sld [smem:[#allocation0]]
  $region42: #{tpu_custom_call.1} parent=0
    _
  %s7 = ssub.s32 1, %s5
  %s8 = scalar_select 0, %s7, %s5
  $region1: #{tpu_custom_call.1} parent=0
    #allocation2 [shape = 'u8[512]{0}', space=smem, size = 0x200, scoped, tag = 'input window, operand 0, single buffered']
    #allocation3 [shape = 's32[1]{0}', space=sflag, size = 0x4, scoped, tag = 'scoped memory for tpu_custom_call.1']
    #allocation4 [shape = 's32[1]{0}', space=sflag, size = 0x4, scoped, tag = 'scoped memory for tpu_custom_call.1']
    #allocation5 [shape = 's32[1]{0}', space=sflag, size = 0x4, scoped, tag = 'scoped memory for tpu_custom_call.1']
    #allocation6 [shape = 's32[1]{0}', space=sflag, size = 0x4, scoped, tag = 'scoped memory for tpu_custom_call.1']
    #allocation7 [shape = 'u8[512]{0}', space=smem, size = 0x200, scoped, tag = 'input window, operand 1, single buffered']
    #allocation8 [shape = 'u8[12288]{0}', space=vmem, size = 0x3000, scoped, tag = 'input window, operand 2, single buffered']
    #allocation9 [shape = 'u8[196608]{0}', space=vmem, size = 0x30000, scoped, tag = 'input window, operand 3, single buffered']
    #allocation10 [shape = 's32[1]{0}', space=sflag, size = 0x4, scoped, tag = 'scoped memory for tpu_custom_call.1']
    #allocation11 [shape = 'u8[12288]{0}', space=vmem, size = 0x3000, scoped, tag = 'output window, operand 0, single buffered']
    %9 = vsyncpa [#allocation5], 0
    %10 = vsyncpa [#allocation6], 0
    %11 = vsyncpa [#allocation3], 0
    %12 = vsyncpa [#allocation10], 0
    %13 = vsyncpa [#allocation4], 0
    // Predicated region
    $region2: #{tpu_custom_call.1} parent=1 // pred_check
      _
    $region3: #{tpu_custom_call.1} parent=1 // pred_check_branch
      %15 = sbr.rel (0) target = $region5
    $region4: #{tpu_custom_call.1} parent=1 // pred_region
      %s17 = ssub.s32 16, 16
      %18 = vsyncadd [#allocation5], %s17
      %21 = dma.hbm_to_smem %s0, 16, [#allocation2], [#allocation5]
    $region5: #{tpu_custom_call.1} parent=1 // pred_fallthru
      _
    // Predicated region
    $region6: #{tpu_custom_call.1} parent=1 // pred_check
      _
    $region7: #{tpu_custom_call.1} parent=1 // pred_check_branch
      %23 = sbr.rel (0) target = $region9
    $region8: #{tpu_custom_call.1} parent=1 // pred_region
      %s25 = ssub.s32 16, 16
      %26 = vsyncadd [#allocation6], %s25
      %s28 = sshll.u32 %s1, 4
      %s29 = int_to_ptr.vmem [resolvable:$true] %s28
      %31 = dma.vmem_to_smem %s29, 16, [#allocation7], [#allocation6]
    $region9: #{tpu_custom_call.1} parent=1 // pred_fallthru
      _
    // Predicated region
    $region10: #{tpu_custom_call.1} parent=1 // pred_check
      _
    $region11: #{tpu_custom_call.1} parent=1 // pred_check_branch
      %33 = sbr.rel (0) target = $region13
    $region12: #{tpu_custom_call.1} parent=1 // pred_region
      %s35 = ssub.s32 384, 384
      %36 = vsyncadd [#allocation3], %s35
      %s37 = sshll.u32 [#allocation8], 4
      %s38 = int_to_ptr.vmem [resolvable:$true] %s37
      %43 = dma.hbm_to_vmem [thread:$0]  %s2, 384, %s38, [#allocation3], 128, 128, 8
    $region13: #{tpu_custom_call.1} parent=1 // pred_fallthru
      _
    // Predicated region
    $region14: #{tpu_custom_call.1} parent=1 // pred_check
      _
    $region15: #{tpu_custom_call.1} parent=1 // pred_check_branch
      %45 = sbr.rel (0) target = $region17
    $region16: #{tpu_custom_call.1} parent=1 // pred_region
      %s47 = ssub.s32 6144, 6144
      %48 = vsyncadd [#allocation10], %s47
      %s49 = sshll.u32 [#allocation9], 4
      %s50 = int_to_ptr.vmem [resolvable:$true] %s49
      %55 = dma.hbm_to_vmem [thread:$0]  %s3, 6144, %s50, [#allocation10], 128, 128, 8
    $region17: #{tpu_custom_call.1} parent=1 // pred_fallthru
      _
    // Predicated region
    $region18: #{tpu_custom_call.1} parent=1 // pred_check
      _
    $region19: #{tpu_custom_call.1} parent=1 // pred_check_branch
      %57 = sbr.rel (0) target = $region21
    $region20: #{tpu_custom_call.1} parent=1 // pred_region
      %58 = dma.done [#allocation5], 16
    $region21: #{tpu_custom_call.1} parent=1 // pred_fallthru
      _
    // Predicated region
    $region22: #{tpu_custom_call.1} parent=1 // pred_check
      _
    $region23: #{tpu_custom_call.1} parent=1 // pred_check_branch
      %60 = sbr.rel (0) target = $region25
    $region24: #{tpu_custom_call.1} parent=1 // pred_region
      %61 = dma.done [#allocation6], 16
    $region25: #{tpu_custom_call.1} parent=1 // pred_fallthru
      _
    // Predicated region
    $region26: #{tpu_custom_call.1} parent=1 // pred_check
      _
    $region27: #{tpu_custom_call.1} parent=1 // pred_check_branch
      %63 = sbr.rel (0) target = $region29
    $region28: #{tpu_custom_call.1} parent=1 // pred_region
      %64 = dma.done [#allocation3], 384
    $region29: #{tpu_custom_call.1} parent=1 // pred_fallthru
      _
    // Predicated region
    $region30: #{tpu_custom_call.1} parent=1 // pred_check
      _
    $region31: #{tpu_custom_call.1} parent=1 // pred_check_branch
      %66 = sbr.rel (0) target = $region33
    $region32: #{tpu_custom_call.1} parent=1 // pred_region
      %67 = dma.done [#allocation10], 6144
    $region33: #{tpu_custom_call.1} parent=1 // pred_fallthru
      _
    %68 = sfence
    %s69 = sld [smem:[#allocation2]]
    %s70 = sld [smem:[#allocation2 + $0x1]]
    %s71 = sld [smem:[#allocation2 + $0x2]]
    %s72 = sld [smem:[#allocation2 + $0x3]]
    %s73 = sld [smem:[#allocation7]]
    %s74 = sld [smem:[#allocation7 + $0x1]]
    %v75 = vlaneseq
    %v76 = vshrl.u32 %v75, 7
    %v77 = vadd.s32 %v76, 8
    %v78 = vadd.s32 %v76, 16
    %v79 = vadd.s32 %v76, 24
    %v80 = vadd.s32 %v76, 32
    %v81 = vadd.s32 %v76, 40
    %v82 = vadd.s32 %v76, 48
    %v83 = vadd.s32 %v76, 56
    %v84 = vadd.s32 %v76, 64
    %v85 = vadd.s32 %v76, 72
    %v86 = vadd.s32 %v76, 80
    %v87 = vadd.s32 %v76, 88
    %v88 = vadd.s32 %v76, 96
    %v89 = vadd.s32 %v76, 104
    %v90 = vadd.s32 %v76, 112
    %v91 = vadd.s32 %v76, 120
    %v92 = vcvt.s32.f32 %v76
    %v93 = vcvt.s32.f32 %v77
    %v94 = vcvt.s32.f32 %v78
    %v95 = vcvt.s32.f32 %v79
    %v96 = vcvt.s32.f32 %v80
    %v97 = vcvt.s32.f32 %v81
    %v98 = vcvt.s32.f32 %v82
    %v99 = vcvt.s32.f32 %v83
    %v100 = vcvt.s32.f32 %v84
    %v101 = vcvt.s32.f32 %v85
    %v102 = vcvt.s32.f32 %v86
    %v103 = vcvt.s32.f32 %v87
    %v104 = vcvt.s32.f32 %v88
    %v105 = vcvt.s32.f32 %v89
    %v106 = vcvt.s32.f32 %v90
    %v107 = vcvt.s32.f32 %v91
    %v108 = vmul.f32 %v92, 0.125
    %v109 = vmul.f32 %v93, 0.125
    %v110 = vmul.f32 %v94, 0.125
    %v111 = vmul.f32 %v95, 0.125
    %v112 = vmul.f32 %v96, 0.125
    %v113 = vmul.f32 %v97, 0.125
    %v114 = vmul.f32 %v98, 0.125
    %v115 = vmul.f32 %v99, 0.125
    %v116 = vmul.f32 %v100, 0.125
    %v117 = vmul.f32 %v101, 0.125
    %v118 = vmul.f32 %v102, 0.125
    %v119 = vmul.f32 %v103, 0.125
    %v120 = vmul.f32 %v104, 0.125
    %v121 = vmul.f32 %v105, 0.125
    %v122 = vmul.f32 %v106, 0.125
    %v123 = vmul.f32 %v107, 0.125
    %v124 = vfloor.f32 %v108
    %v125 = vfloor.f32 %v109
    %v126 = vfloor.f32 %v110
    %v127 = vfloor.f32 %v111
    %v128 = vfloor.f32 %v112
    %v129 = vfloor.f32 %v113
    %v130 = vfloor.f32 %v114
    %v131 = vfloor.f32 %v115
    %v132 = vfloor.f32 %v116
    %v133 = vfloor.f32 %v117
    %v134 = vfloor.f32 %v118
    %v135 = vfloor.f32 %v119
    %v136 = vfloor.f32 %v120
    %v137 = vfloor.f32 %v121
    %v138 = vfloor.f32 %v122
    %v139 = vfloor.f32 %v123
    %v140 = vlaneseq
    %v141 = vand.u32 %v140, 127
    %v142 = vcvt.s32.f32 %v141
    %v143 = vmul.f32 %v142, 0.125
    %v144 = vfloor.f32 %v143
    %v145 = vmul.f32 %v144, 8.0
    %v146 = vsub.f32 %v142, %v145
    %vm147 = vcmp.eq.f32.partialorder %v146, %v92
    %v148 = vsel %vm147, 1, 0
    %v149 = vcvt.s32.f32 %v148
    %v150 = vld [vmem:[#allocation8] sm:$0xff]
    %s151 = scalar_lea.vmem [#allocation8], 8
    %v152 = vld [vmem:[%s151] sm:$0xff]
    %s153 = scalar_lea.vmem [#allocation8], 16
    %v154 = vld [vmem:[%s153] sm:$0xff]
    %v155 = vstv %s70
    %v156 = vmul.f32 %v150, %v155
    %v157 = vstv %s71
    %v158 = vmul.f32 %v152, %v157
    %v159 = vadd.f32 %v156, %v158
    %v160 = vstv %s72
    %v161 = vmul.f32 %v154, %v160
    %v162 = vadd.f32 %v159, %v161
    %v163 = vsub.f32 0.0, %v162
    %v164 = vstv %s69
    %v165 = vmul.f32 %v150, %v164
    %v166 = vmul.f32 %v152, %v160
    %v167 = vadd.f32 %v165, %v166
    %v168 = vmul.f32 %v154, %v157
    %v169 = vsub.f32 %v167, %v168
    %v170 = vsub.f32 0.0, %v150
    %v171 = vmul.f32 %v170, %v160
    %v172 = vmul.f32 %v152, %v164
    %v173 = vadd.f32 %v171, %v172
    %v174 = vmul.f32 %v154, %v155
    %v175 = vadd.f32 %v173, %v174
    %v176 = vmul.f32 %v150, %v157
    %v177 = vmul.f32 %v152, %v155
    %v178 = vsub.f32 %v176, %v177
    %v179 = vmul.f32 %v154, %v164
    %v180 = vadd.f32 %v178, %v179
    %v181 = vmul.f32 %v169, %v169
    %v182 = vmul.f32 %v175, %v175
    %v183 = vadd.f32 %v181, %v182
    %v184 = vmul.f32 %v180, %v180
    %v185 = vadd.f32 %v183, %v184
    %v186 = vmul.f32 %v163, %v163
    %v187 = vsub.f32 %v186, %v185
    %v188 = vmul.f32 %v163, 2.0
    %v189 = vrsqrt.pop %v185
    %v190 = vmul.f32 %v185, %v189
    %vm191 = vcmp.eq.f32.partialorder %v185, inf
    %v192 = vsel %vm191, %v185, %v190
    %vm193 = vcmp.eq.f32.partialorder %v185, 0.0
    %v194 = vand.u32 %v185, 2147483648
    %v195 = vsel %vm193, %v194, %v192
    %v196 = vmul.f32 %v188, %v195
    %v197 = vadd.f32 %v186, %v185
    %vm198 = vcmp.eq.f32.partialorder %v187, 0.0
    %v199 = vsel %vm198, 1.0, %v187
    %v200 = vrcp.pop %v199
    %v201 = vmul.f32 %v196, %v200
    %v202 = vand.u32 2147483647, %v201
    %vm203 = vcmp.gt.f32.partialorder %v202, 2.4142137
    %vm204 = vcmp.gt.f32.partialorder %v202, 0.41421357
    %vm205 = vmxor %vm203, 1
    %vm206 = vmand %vm204, %vm205
    %v207 = vadd.f32 %v202, 1.0
    %v208 = vsel %vm203, %v202, %v207
    %v209 = vrcp.pop %v208
    %v210 = vsub.f32 0.0, %v209
    %v211 = vsub.f32 %v202, 1.0
    %v212 = vmul.f32 %v211, %v209
    %v213 = vsel %vm206, %v212, %v202
    %v214 = vsel %vm203, %v210, %v213
    %v215 = vsel %vm206, 0.7853982, 0.0
    %v216 = vsel %vm203, 1.5707964, %v215
    %v217 = vmul.f32 %v214, %v214
    %v218 = vmul.f32 %v217, 0.080537446
    %v219 = vsub.f32 %v218, 0.13877685
    %v220 = vmul.f32 %v219, %v217
    %v221 = vadd.f32 %v220, 0.19977711
    %v222 = vmul.f32 %v221, %v217
    %v223 = vsub.f32 %v222, 0.3333295
    %v224 = vmul.f32 %v223, %v217
    %v225 = vmul.f32 %v224, %v214
    %v226 = vadd.f32 %v225, %v214
    %v227 = vadd.f32 %v216, %v226
    %vm228 = vcmp.lt.f32.partialorder %v201, 0.0
    %v229 = vsub.f32 0.0, %v227
    %v230 = vsel %vm228, %v229, %v227
    %vm231 = vcmp.lt.f32.partialorder %v187, 0.0
    %vm232 = vcmp.ge.f32.partialorder %v196, 0.0
    %v233 = vsel %vm232, 3.1415927, -3.1415927
    %v234 = vsel %vm231, %v233, 0.0
    %v235 = vadd.f32 %v230, %v234
    %v236 = vsel %vm232, 1.5707964, -1.5707964
    %v237 = vsel %vm198, %v236, %v235
    %v238 = vstv %s73
    %v239 = vmul.f32 %v237, %v238
    %v240 = vstv %s74
    %v241 = vadd.f32 %v239, %v240
    %v242 = vfloor.f32 %v241
    %v243 = vsub.f32 %v241, %v242
    %v244 = vmul.f32 %v243, 256.0
    %v245 = vfloor.f32 %v244
    %v246 = vmul.f32 %v245, 0.0625
    %v247 = vfloor.f32 %v246
    %v248 = vmul.f32 %v247, 16.0
    %v249 = vsub.f32 %v245, %v248
    %vm250 = vcmp.eq.f32.partialorder %v247, %v124
    %vm251 = vcmp.eq.f32.partialorder %v247, %v125
    %vm252 = vcmp.eq.f32.partialorder %v247, %v126
    %vm253 = vcmp.eq.f32.partialorder %v247, %v127
    %vm254 = vcmp.eq.f32.partialorder %v247, %v128
    %vm255 = vcmp.eq.f32.partialorder %v247, %v129
    %vm256 = vcmp.eq.f32.partialorder %v247, %v130
    %vm257 = vcmp.eq.f32.partialorder %v247, %v131
    %vm258 = vcmp.eq.f32.partialorder %v247, %v132
    %vm259 = vcmp.eq.f32.partialorder %v247, %v133
    %vm260 = vcmp.eq.f32.partialorder %v247, %v134
    %vm261 = vcmp.eq.f32.partialorder %v247, %v135
    %vm262 = vcmp.eq.f32.partialorder %v247, %v136
    %vm263 = vcmp.eq.f32.partialorder %v247, %v137
    %vm264 = vcmp.eq.f32.partialorder %v247, %v138
    %vm265 = vcmp.eq.f32.partialorder %v247, %v139
    %v266 = vsel %vm250, 1, 0
    %v267 = vsel %vm251, 1, 0
    %v268 = vsel %vm252, 1, 0
    %v269 = vsel %vm253, 1, 0
    %v270 = vsel %vm254, 1, 0
    %v271 = vsel %vm255, 1, 0
    %v272 = vsel %vm256, 1, 0
    %v273 = vsel %vm257, 1, 0
    %v274 = vsel %vm258, 1, 0
    %v275 = vsel %vm259, 1, 0
    %v276 = vsel %vm260, 1, 0
    %v277 = vsel %vm261, 1, 0
    %v278 = vsel %vm262, 1, 0
    %v279 = vsel %vm263, 1, 0
    %v280 = vsel %vm264, 1, 0
    %v281 = vsel %vm265, 1, 0
    %v282 = vcvt.s32.f32 %v266
    %v283 = vcvt.s32.f32 %v267
    %v284 = vcvt.s32.f32 %v268
    %v285 = vcvt.s32.f32 %v269
    %v286 = vcvt.s32.f32 %v270
    %v287 = vcvt.s32.f32 %v271
    %v288 = vcvt.s32.f32 %v272
    %v289 = vcvt.s32.f32 %v273
    %v290 = vcvt.s32.f32 %v274
    %v291 = vcvt.s32.f32 %v275
    %v292 = vcvt.s32.f32 %v276
    %v293 = vcvt.s32.f32 %v277
    %v294 = vcvt.s32.f32 %v278
    %v295 = vcvt.s32.f32 %v279
    %v296 = vcvt.s32.f32 %v280
    %v297 = vcvt.s32.f32 %v281
    %vm298 = vcmp.eq.f32.partialorder %v249, %v124
    %vm299 = vcmp.eq.f32.partialorder %v249, %v125
    %vm300 = vcmp.eq.f32.partialorder %v249, %v126
    %vm301 = vcmp.eq.f32.partialorder %v249, %v127
    %vm302 = vcmp.eq.f32.partialorder %v249, %v128
    %vm303 = vcmp.eq.f32.partialorder %v249, %v129
    %vm304 = vcmp.eq.f32.partialorder %v249, %v130
    %vm305 = vcmp.eq.f32.partialorder %v249, %v131
    %vm306 = vcmp.eq.f32.partialorder %v249, %v132
    %vm307 = vcmp.eq.f32.partialorder %v249, %v133
    %vm308 = vcmp.eq.f32.partialorder %v249, %v134
    %vm309 = vcmp.eq.f32.partialorder %v249, %v135
    %vm310 = vcmp.eq.f32.partialorder %v249, %v136
    %vm311 = vcmp.eq.f32.partialorder %v249, %v137
    %vm312 = vcmp.eq.f32.partialorder %v249, %v138
    %vm313 = vcmp.eq.f32.partialorder %v249, %v139
    %v314 = vsel %vm298, 1, 0
    %v315 = vsel %vm299, 1, 0
    %v316 = vsel %vm300, 1, 0
    %v317 = vsel %vm301, 1, 0
    %v318 = vsel %vm302, 1, 0
    %v319 = vsel %vm303, 1, 0
    %v320 = vsel %vm304, 1, 0
    %v321 = vsel %vm305, 1, 0
    %v322 = vsel %vm306, 1, 0
    %v323 = vsel %vm307, 1, 0
    %v324 = vsel %vm308, 1, 0
    %v325 = vsel %vm309, 1, 0
    %v326 = vsel %vm310, 1, 0
    %v327 = vsel %vm311, 1, 0
    %v328 = vsel %vm312, 1, 0
    %v329 = vsel %vm313, 1, 0
    %v330 = vcvt.s32.f32 %v314
    %v331 = vcvt.s32.f32 %v315
    %v332 = vcvt.s32.f32 %v316
    %v333 = vcvt.s32.f32 %v317
    %v334 = vcvt.s32.f32 %v318
    %v335 = vcvt.s32.f32 %v319
    %v336 = vcvt.s32.f32 %v320
    %v337 = vcvt.s32.f32 %v321
    %v338 = vcvt.s32.f32 %v322
    %v339 = vcvt.s32.f32 %v323
    %v340 = vcvt.s32.f32 %v324
    %v341 = vcvt.s32.f32 %v325
    %v342 = vcvt.s32.f32 %v326
    %v343 = vcvt.s32.f32 %v327
    %v344 = vcvt.s32.f32 %v328
    %v345 = vcvt.s32.f32 %v329
    %v346 = vld [vmem:[#allocation9] sm:$0xff]
    %v347 = vld [vmem:[#allocation9 + $0x8] sm:$0xff]
    %v348 = vld [vmem:[#allocation9 + $0x10] sm:$0xff]
    %v349 = vld [vmem:[#allocation9 + $0x18] sm:$0xff]
    %v350 = vld [vmem:[#allocation9 + $0x20] sm:$0xff]
    %v351 = vld [vmem:[#allocation9 + $0x28] sm:$0xff]
    %v352 = vld [vmem:[#allocation9 + $0x30] sm:$0xff]
    %v353 = vld [vmem:[#allocation9 + $0x38] sm:$0xff]
    %v354 = vld [vmem:[#allocation9 + $0x40] sm:$0xff]
    %v355 = vld [vmem:[#allocation9 + $0x48] sm:$0xff]
    %v356 = vld [vmem:[#allocation9 + $0x50] sm:$0xff]
    %v357 = vld [vmem:[#allocation9 + $0x58] sm:$0xff]
    %v358 = vld [vmem:[#allocation9 + $0x60] sm:$0xff]
    %v359 = vld [vmem:[#allocation9 + $0x68] sm:$0xff]
    %v360 = vld [vmem:[#allocation9 + $0x70] sm:$0xff]
    %v361 = vld [vmem:[#allocation9 + $0x78] sm:$0xff]
    %362 = vmatprep.subr.mxu0 0.0
    %363 = vmatpush1.msra.mxu0 %v297
    %364 = vmatprep.subr.mxu0 0.0
    %365 = vmatpush1.msra.mxu0 %v296
    %366 = vmatprep.subr.mxu0 0.0
    %367 = vmatpush1.msra.mxu0 %v295
    %368 = vmatprep.subr.mxu0 0.0
    %369 = vmatpush1.msra.mxu0 %v294
    %370 = vmatprep.subr.mxu0 0.0
    %371 = vmatpush1.msra.mxu0 %v293
    %372 = vmatprep.subr.mxu0 0.0
    %373 = vmatpush1.msra.mxu0 %v292
    %374 = vmatprep.subr.mxu0 0.0
    %375 = vmatpush1.msra.mxu0 %v291
    %376 = vmatprep.subr.mxu0 0.0
    %377 = vmatpush1.msra.mxu0 %v290
    %378 = vmatprep.subr.mxu0 0.0
    %379 = vmatpush1.msra.mxu0 %v289
    %380 = vmatprep.subr.mxu0 0.0
    %381 = vmatpush1.msra.mxu0 %v288
    %382 = vmatprep.subr.mxu0 0.0
    %383 = vmatpush1.msra.mxu0 %v287
    %384 = vmatprep.subr.mxu0 0.0
    %385 = vmatpush1.msra.mxu0 %v286
    %386 = vmatprep.subr.mxu0 0.0
    %387 = vmatpush1.msra.mxu0 %v285
    %388 = vmatprep.subr.mxu0 0.0
    %389 = vmatpush1.msra.mxu0 %v284
    %390 = vmatprep.subr.mxu0 0.0
    %391 = vmatpush1.msra.mxu0 %v283
    %392 = vmatprep.subr.mxu0 0.0
    %393 = vmatpush1.msra.mxu0 %v282
    %394 = vmatprep.subr.mxu0 0.0
    %395 = vmatpush2.msra.mxu0 0.0
    %396 = vmatprep.subr.mxu0 0.0
    %397 = vmatpush2.msra.mxu0 0.0
    %398 = vmatprep.subr.mxu0 0.0
    %399 = vmatpush2.msra.mxu0 0.0
    %400 = vmatprep.subr.mxu0 0.0
    %401 = vmatpush2.msra.mxu0 0.0
    %402 = vmatprep.subr.mxu0 0.0
    %403 = vmatpush2.msra.mxu0 0.0
    %404 = vmatprep.subr.mxu0 0.0
    %405 = vmatpush2.msra.mxu0 0.0
    %406 = vmatprep.subr.mxu0 0.0
    %407 = vmatpush2.msra.mxu0 0.0
    %408 = vmatprep.subr.mxu0 0.0
    %409 = vmatpush2.msra.mxu0 0.0
    %410 = vmatprep.subr.mxu0 0.0
    %411 = vmatpush2.msra.mxu0 0.0
    %412 = vmatprep.subr.mxu0 0.0
    %413 = vmatpush2.msra.mxu0 0.0
    %414 = vmatprep.subr.mxu0 0.0
    %415 = vmatpush2.msra.mxu0 0.0
    %416 = vmatprep.subr.mxu0 0.0
    %417 = vmatpush2.msra.mxu0 0.0
    %418 = vmatprep.subr.mxu0 0.0
    %419 = vmatpush2.msra.mxu0 0.0
    %420 = vmatprep.subr.mxu0 0.0
    %421 = vmatpush2.msra.mxu0 0.0
    %422 = vmatprep.subr.mxu0 0.0
    %423 = vmatpush2.msra.mxu0 0.0
    %424 = vmatprep.subr.mxu0 0.0
    %425 = vmatpush2.msra.mxu0 0.0
    %426 = vmatprep.mubr.f32.mxu0 0.0
    %427 = vmatmul.mubr.f32.gmra.mxu0 %v346
    %v428 = vpop.f32.mrf.mxu0
    %v429 = vadd.f32 0.0, %v428
    %v430 = vpop.f32.mrf.mxu0
    %431 = vmatprep.mubr.f32.mxu0 0.0
    %432 = vmatmul.mubr.f32.gmra.mxu0 %v347
    %v433 = vpop.f32.mrf.mxu0
    %v434 = vadd.f32 0.0, %v433
    %v435 = vpop.f32.mrf.mxu0
    %436 = vmatprep.mubr.f32.mxu0 0.0
    %437 = vmatmul.mubr.f32.gmra.mxu0 %v348
    %v438 = vpop.f32.mrf.mxu0
    %v439 = vadd.f32 0.0, %v438
    %v440 = vpop.f32.mrf.mxu0
    %441 = vmatprep.mubr.f32.mxu0 0.0
    %442 = vmatmul.mubr.f32.gmra.mxu0 %v349
    %v443 = vpop.f32.mrf.mxu0
    %v444 = vadd.f32 0.0, %v443
    %v445 = vpop.f32.mrf.mxu0
    %446 = vmatprep.mubr.f32.mxu0 0.0
    %447 = vmatmul.mubr.f32.gmra.mxu0 %v350
    %v448 = vpop.f32.mrf.mxu0
    %v449 = vadd.f32 0.0, %v448
    %v450 = vpop.f32.mrf.mxu0
    %451 = vmatprep.mubr.f32.mxu0 0.0
    %452 = vmatmul.mubr.f32.gmra.mxu0 %v351
    %v453 = vpop.f32.mrf.mxu0
    %v454 = vadd.f32 0.0, %v453
    %v455 = vpop.f32.mrf.mxu0
    %456 = vmatprep.mubr.f32.mxu0 0.0
    %457 = vmatmul.mubr.f32.gmra.mxu0 %v352
    %v458 = vpop.f32.mrf.mxu0
    %v459 = vadd.f32 0.0, %v458
    %v460 = vpop.f32.mrf.mxu0
    %461 = vmatprep.mubr.f32.mxu0 0.0
    %462 = vmatmul.mubr.f32.gmra.mxu0 %v353
    %v463 = vpop.f32.mrf.mxu0
    %v464 = vadd.f32 0.0, %v463
    %v465 = vpop.f32.mrf.mxu0
    %466 = vmatprep.mubr.f32.mxu0 0.0
    %467 = vmatmul.mubr.f32.gmra.mxu0 %v354
    %v468 = vpop.f32.mrf.mxu0
    %v469 = vadd.f32 0.0, %v468
    %v470 = vpop.f32.mrf.mxu0
    %471 = vmatprep.mubr.f32.mxu0 0.0
    %472 = vmatmul.mubr.f32.gmra.mxu0 %v355
    %v473 = vpop.f32.mrf.mxu0
    %v474 = vadd.f32 0.0, %v473
    %v475 = vpop.f32.mrf.mxu0
    %476 = vmatprep.mubr.f32.mxu0 0.0
    %477 = vmatmul.mubr.f32.gmra.mxu0 %v356
    %v478 = vpop.f32.mrf.mxu0
    %v479 = vadd.f32 0.0, %v478
    %v480 = vpop.f32.mrf.mxu0
    %481 = vmatprep.mubr.f32.mxu0 0.0
    %482 = vmatmul.mubr.f32.gmra.mxu0 %v357
    %v483 = vpop.f32.mrf.mxu0
    %v484 = vadd.f32 0.0, %v483
    %v485 = vpop.f32.mrf.mxu0
    %486 = vmatprep.mubr.f32.mxu0 0.0
    %487 = vmatmul.mubr.f32.gmra.mxu0 %v358
    %v488 = vpop.f32.mrf.mxu0
    %v489 = vadd.f32 0.0, %v488
    %v490 = vpop.f32.mrf.mxu0
    %491 = vmatprep.mubr.f32.mxu0 0.0
    %492 = vmatmul.mubr.f32.gmra.mxu0 %v359
    %v493 = vpop.f32.mrf.mxu0
    %v494 = vadd.f32 0.0, %v493
    %v495 = vpop.f32.mrf.mxu0
    %496 = vmatprep.mubr.f32.mxu0 0.0
    %497 = vmatmul.mubr.f32.gmra.mxu0 %v360
    %v498 = vpop.f32.mrf.mxu0
    %v499 = vadd.f32 0.0, %v498
    %v500 = vpop.f32.mrf.mxu0
    %501 = vmatprep.mubr.f32.mxu0 0.0
    %502 = vmatmul.mubr.f32.gmra.mxu0 %v361
    %v503 = vpop.f32.mrf.mxu0
    %v504 = vadd.f32 0.0, %v503
    %v505 = vpop.f32.mrf.mxu0
    %506 = vdwg.mxu0
    %v507 = vmul.f32 %v429, %v330
    %v508 = vmul.f32 %v434, %v331
    %v509 = vmul.f32 %v439, %v332
    %v510 = vmul.f32 %v444, %v333
    %v511 = vmul.f32 %v449, %v334
    %v512 = vmul.f32 %v454, %v335
    %v513 = vmul.f32 %v459, %v336
    %v514 = vmul.f32 %v464, %v337
    %v515 = vmul.f32 %v469, %v338
    %v516 = vmul.f32 %v474, %v339
    %v517 = vmul.f32 %v479, %v340
    %v518 = vmul.f32 %v484, %v341
    %v519 = vmul.f32 %v489, %v342
    %v520 = vmul.f32 %v494, %v343
    %v521 = vmul.f32 %v499, %v344
    %v522 = vmul.f32 %v504, %v345
    %523 = vmatprep.subr.mxu0 0.0
    %524 = vmatpush1.msra.mxu0 %v522
    %525 = vmatprep.subr.mxu0 0.0
    %526 = vmatpush1.msra.mxu0 %v521
    %527 = vmatprep.subr.mxu0 0.0
    %528 = vmatpush1.msra.mxu0 %v520
    %529 = vmatprep.subr.mxu0 0.0
    %530 = vmatpush1.msra.mxu0 %v519
    %531 = vmatprep.subr.mxu0 0.0
    %532 = vmatpush1.msra.mxu0 %v518
    %533 = vmatprep.subr.mxu0 0.0
    %534 = vmatpush1.msra.mxu0 %v517
    %535 = vmatprep.subr.mxu0 0.0
    %536 = vmatpush1.msra.mxu0 %v516
    %537 = vmatprep.subr.mxu0 0.0
    %538 = vmatpush1.msra.mxu0 %v515
    %539 = vmatprep.subr.mxu0 0.0
    %540 = vmatpush1.msra.mxu0 %v514
    %541 = vmatprep.subr.mxu0 0.0
    %542 = vmatpush1.msra.mxu0 %v513
    %543 = vmatprep.subr.mxu0 0.0
    %544 = vmatpush1.msra.mxu0 %v512
    %545 = vmatprep.subr.mxu0 0.0
    %546 = vmatpush1.msra.mxu0 %v511
    %547 = vmatprep.subr.mxu0 0.0
    %548 = vmatpush1.msra.mxu0 %v510
    %549 = vmatprep.subr.mxu0 0.0
    %550 = vmatpush1.msra.mxu0 %v509
    %551 = vmatprep.subr.mxu0 0.0
    %552 = vmatpush1.msra.mxu0 %v508
    %553 = vmatprep.subr.mxu0 0.0
    %554 = vmatpush1.msra.mxu0 %v507
    %555 = vmatprep.subr.mxu0 0.0
    %556 = vmatpush2.msra.mxu0 0.0
    %557 = vmatprep.subr.mxu0 0.0
    %558 = vmatpush2.msra.mxu0 0.0
    %559 = vmatprep.subr.mxu0 0.0
    %560 = vmatpush2.msra.mxu0 0.0
    %561 = vmatprep.subr.mxu0 0.0
    %562 = vmatpush2.msra.mxu0 0.0
    %563 = vmatprep.subr.mxu0 0.0
    %564 = vmatpush2.msra.mxu0 0.0
    %565 = vmatprep.subr.mxu0 0.0
    %566 = vmatpush2.msra.mxu0 0.0
    %567 = vmatprep.subr.mxu0 0.0
    %568 = vmatpush2.msra.mxu0 0.0
    %569 = vmatprep.subr.mxu0 0.0
    %570 = vmatpush2.msra.mxu0 0.0
    %571 = vmatprep.subr.mxu0 0.0
    %572 = vmatpush2.msra.mxu0 0.0
    %573 = vmatprep.subr.mxu0 0.0
    %574 = vmatpush2.msra.mxu0 0.0
    %575 = vmatprep.subr.mxu0 0.0
    %576 = vmatpush2.msra.mxu0 0.0
    %577 = vmatprep.subr.mxu0 0.0
    %578 = vmatpush2.msra.mxu0 0.0
    %579 = vmatprep.subr.mxu0 0.0
    %580 = vmatpush2.msra.mxu0 0.0
    %581 = vmatprep.subr.mxu0 0.0
    %582 = vmatpush2.msra.mxu0 0.0
    %583 = vmatprep.subr.mxu0 0.0
    %584 = vmatpush2.msra.mxu0 0.0
    %585 = vmatprep.subr.mxu0 0.0
    %586 = vmatpush2.msra.mxu0 0.0
    %587 = vmatprep.mubr.f32.mxu0 0.0
    %588 = vmatmul.mubr.f32.gmra.mxu0 %v149
    %v589 = vpop.f32.mrf.mxu0
    %v590 = vadd.f32 0.0, %v589
    %v591 = vpop.f32.mrf.mxu0
    %592 = vdwg.mxu0
    %v593 = vmul.f32 %v590, %v197
    %594 = vst [vmem:[#allocation11] sm:$0xff] %v593
    %s595 = scalar_lea.vmem [#allocation9], 128
    %v596 = vld [vmem:[%s595] sm:$0xff]
    %v597 = vld [vmem:[%s595 + $0x8] sm:$0xff]
    %v598 = vld [vmem:[%s595 + $0x10] sm:$0xff]
    %v599 = vld [vmem:[%s595 + $0x18] sm:$0xff]
    %v600 = vld [vmem:[%s595 + $0x20] sm:$0xff]
    %v601 = vld [vmem:[%s595 + $0x28] sm:$0xff]
    %v602 = vld [vmem:[%s595 + $0x30] sm:$0xff]
    %v603 = vld [vmem:[%s595 + $0x38] sm:$0xff]
    %v604 = vld [vmem:[%s595 + $0x40] sm:$0xff]
    %v605 = vld [vmem:[%s595 + $0x48] sm:$0xff]
    %v606 = vld [vmem:[%s595 + $0x50] sm:$0xff]
    %v607 = vld [vmem:[%s595 + $0x58] sm:$0xff]
    %v608 = vld [vmem:[%s595 + $0x60] sm:$0xff]
    %v609 = vld [vmem:[%s595 + $0x68] sm:$0xff]
    %v610 = vld [vmem:[%s595 + $0x70] sm:$0xff]
    %v611 = vld [vmem:[%s595 + $0x78] sm:$0xff]
    %612 = vmatprep.subr.mxu0 0.0
    %613 = vmatpush1.msra.mxu0 %v297
    %614 = vmatprep.subr.mxu0 0.0
    %615 = vmatpush1.msra.mxu0 %v296
    %616 = vmatprep.subr.mxu0 0.0
    %617 = vmatpush1.msra.mxu0 %v295
    %618 = vmatprep.subr.mxu0 0.0
    %619 = vmatpush1.msra.mxu0 %v294
    %620 = vmatprep.subr.mxu0 0.0
    %621 = vmatpush1.msra.mxu0 %v293
    %622 = vmatprep.subr.mxu0 0.0
    %623 = vmatpush1.msra.mxu0 %v292
    %624 = vmatprep.subr.mxu0 0.0
    %625 = vmatpush1.msra.mxu0 %v291
    %626 = vmatprep.subr.mxu0 0.0
    %627 = vmatpush1.msra.mxu0 %v290
    %628 = vmatprep.subr.mxu0 0.0
    %629 = vmatpush1.msra.mxu0 %v289
    %630 = vmatprep.subr.mxu0 0.0
    %631 = vmatpush1.msra.mxu0 %v288
    %632 = vmatprep.subr.mxu0 0.0
    %633 = vmatpush1.msra.mxu0 %v287
    %634 = vmatprep.subr.mxu0 0.0
    %635 = vmatpush1.msra.mxu0 %v286
    %636 = vmatprep.subr.mxu0 0.0
    %637 = vmatpush1.msra.mxu0 %v285
    %638 = vmatprep.subr.mxu0 0.0
    %639 = vmatpush1.msra.mxu0 %v284
    %640 = vmatprep.subr.mxu0 0.0
    %641 = vmatpush1.msra.mxu0 %v283
    %642 = vmatprep.subr.mxu0 0.0
    %643 = vmatpush1.msra.mxu0 %v282
    %644 = vmatprep.subr.mxu0 0.0
    %645 = vmatpush2.msra.mxu0 0.0
    %646 = vmatprep.subr.mxu0 0.0
    %647 = vmatpush2.msra.mxu0 0.0
    %648 = vmatprep.subr.mxu0 0.0
    %649 = vmatpush2.msra.mxu0 0.0
    %650 = vmatprep.subr.mxu0 0.0
    %651 = vmatpush2.msra.mxu0 0.0
    %652 = vmatprep.subr.mxu0 0.0
    %653 = vmatpush2.msra.mxu0 0.0
    %654 = vmatprep.subr.mxu0 0.0
    %655 = vmatpush2.msra.mxu0 0.0
    %656 = vmatprep.subr.mxu0 0.0
    %657 = vmatpush2.msra.mxu0 0.0
    %658 = vmatprep.subr.mxu0 0.0
    %659 = vmatpush2.msra.mxu0 0.0
    %660 = vmatprep.subr.mxu0 0.0
    %661 = vmatpush2.msra.mxu0 0.0
    %662 = vmatprep.subr.mxu0 0.0
    %663 = vmatpush2.msra.mxu0 0.0
    %664 = vmatprep.subr.mxu0 0.0
    %665 = vmatpush2.msra.mxu0 0.0
    %666 = vmatprep.subr.mxu0 0.0
    %667 = vmatpush2.msra.mxu0 0.0
    %668 = vmatprep.subr.mxu0 0.0
    %669 = vmatpush2.msra.mxu0 0.0
    %670 = vmatprep.subr.mxu0 0.0
    %671 = vmatpush2.msra.mxu0 0.0
    %672 = vmatprep.subr.mxu0 0.0
    %673 = vmatpush2.msra.mxu0 0.0
    %674 = vmatprep.subr.mxu0 0.0
    %675 = vmatpush2.msra.mxu0 0.0
    %676 = vmatprep.mubr.f32.mxu0 0.0
    %677 = vmatmul.mubr.f32.gmra.mxu0 %v596
    %v678 = vpop.f32.mrf.mxu0
    %v679 = vadd.f32 0.0, %v678
    %v680 = vpop.f32.mrf.mxu0
    %681 = vmatprep.mubr.f32.mxu0 0.0
    %682 = vmatmul.mubr.f32.gmra.mxu0 %v597
    %v683 = vpop.f32.mrf.mxu0
    %v684 = vadd.f32 0.0, %v683
    %v685 = vpop.f32.mrf.mxu0
    %686 = vmatprep.mubr.f32.mxu0 0.0
    %687 = vmatmul.mubr.f32.gmra.mxu0 %v598
    %v688 = vpop.f32.mrf.mxu0
    %v689 = vadd.f32 0.0, %v688
    %v690 = vpop.f32.mrf.mxu0
    %691 = vmatprep.mubr.f32.mxu0 0.0
    %692 = vmatmul.mubr.f32.gmra.mxu0 %v599
    %v693 = vpop.f32.mrf.mxu0
    %v694 = vadd.f32 0.0, %v693
    %v695 = vpop.f32.mrf.mxu0
    %696 = vmatprep.mubr.f32.mxu0 0.0
    %697 = vmatmul.mubr.f32.gmra.mxu0 %v600
    %v698 = vpop.f32.mrf.mxu0
    %v699 = vadd.f32 0.0, %v698
    %v700 = vpop.f32.mrf.mxu0
    %701 = vmatprep.mubr.f32.mxu0 0.0
    %702 = vmatmul.mubr.f32.gmra.mxu0 %v601
    %v703 = vpop.f32.mrf.mxu0
    %v704 = vadd.f32 0.0, %v703
    %v705 = vpop.f32.mrf.mxu0
    %706 = vmatprep.mubr.f32.mxu0 0.0
    %707 = vmatmul.mubr.f32.gmra.mxu0 %v602
    %v708 = vpop.f32.mrf.mxu0
    %v709 = vadd.f32 0.0, %v708
    %v710 = vpop.f32.mrf.mxu0
    %711 = vmatprep.mubr.f32.mxu0 0.0
    %712 = vmatmul.mubr.f32.gmra.mxu0 %v603
    %v713 = vpop.f32.mrf.mxu0
    %v714 = vadd.f32 0.0, %v713
    %v715 = vpop.f32.mrf.mxu0
    %716 = vmatprep.mubr.f32.mxu0 0.0
    %717 = vmatmul.mubr.f32.gmra.mxu0 %v604
    %v718 = vpop.f32.mrf.mxu0
    %v719 = vadd.f32 0.0, %v718
    %v720 = vpop.f32.mrf.mxu0
    %721 = vmatprep.mubr.f32.mxu0 0.0
    %722 = vmatmul.mubr.f32.gmra.mxu0 %v605
    %v723 = vpop.f32.mrf.mxu0
    %v724 = vadd.f32 0.0, %v723
    %v725 = vpop.f32.mrf.mxu0
    %726 = vmatprep.mubr.f32.mxu0 0.0
    %727 = vmatmul.mubr.f32.gmra.mxu0 %v606
    %v728 = vpop.f32.mrf.mxu0
    %v729 = vadd.f32 0.0, %v728
    %v730 = vpop.f32.mrf.mxu0
    %731 = vmatprep.mubr.f32.mxu0 0.0
    %732 = vmatmul.mubr.f32.gmra.mxu0 %v607
    %v733 = vpop.f32.mrf.mxu0
    %v734 = vadd.f32 0.0, %v733
    %v735 = vpop.f32.mrf.mxu0
    %736 = vmatprep.mubr.f32.mxu0 0.0
    %737 = vmatmul.mubr.f32.gmra.mxu0 %v608
    %v738 = vpop.f32.mrf.mxu0
    %v739 = vadd.f32 0.0, %v738
    %v740 = vpop.f32.mrf.mxu0
    %741 = vmatprep.mubr.f32.mxu0 0.0
    %742 = vmatmul.mubr.f32.gmra.mxu0 %v609
    %v743 = vpop.f32.mrf.mxu0
    %v744 = vadd.f32 0.0, %v743
    %v745 = vpop.f32.mrf.mxu0
    %746 = vmatprep.mubr.f32.mxu0 0.0
    %747 = vmatmul.mubr.f32.gmra.mxu0 %v610
    %v748 = vpop.f32.mrf.mxu0
    %v749 = vadd.f32 0.0, %v748
    %v750 = vpop.f32.mrf.mxu0
    %751 = vmatprep.mubr.f32.mxu0 0.0
    %752 = vmatmul.mubr.f32.gmra.mxu0 %v611
    %v753 = vpop.f32.mrf.mxu0
    %v754 = vadd.f32 0.0, %v753
    %v755 = vpop.f32.mrf.mxu0
    %756 = vdwg.mxu0
    %v757 = vmul.f32 %v679, %v330
    %v758 = vmul.f32 %v684, %v331
    %v759 = vmul.f32 %v689, %v332
    %v760 = vmul.f32 %v694, %v333
    %v761 = vmul.f32 %v699, %v334
    %v762 = vmul.f32 %v704, %v335
    %v763 = vmul.f32 %v709, %v336
    %v764 = vmul.f32 %v714, %v337
    %v765 = vmul.f32 %v719, %v338
    %v766 = vmul.f32 %v724, %v339
    %v767 = vmul.f32 %v729, %v340
    %v768 = vmul.f32 %v734, %v341
    %v769 = vmul.f32 %v739, %v342
    %v770 = vmul.f32 %v744, %v343
    %v771 = vmul.f32 %v749, %v344
    %v772 = vmul.f32 %v754, %v345
    %773 = vmatprep.subr.mxu0 0.0
    %774 = vmatpush1.msra.mxu0 %v772
    %775 = vmatprep.subr.mxu0 0.0
    %776 = vmatpush1.msra.mxu0 %v771
    %777 = vmatprep.subr.mxu0 0.0
    %778 = vmatpush1.msra.mxu0 %v770
    %779 = vmatprep.subr.mxu0 0.0
    %780 = vmatpush1.msra.mxu0 %v769
    %781 = vmatprep.subr.mxu0 0.0
    %782 = vmatpush1.msra.mxu0 %v768
    %783 = vmatprep.subr.mxu0 0.0
    %784 = vmatpush1.msra.mxu0 %v767
    %785 = vmatprep.subr.mxu0 0.0
    %786 = vmatpush1.msra.mxu0 %v766
    %787 = vmatprep.subr.mxu0 0.0
    %788 = vmatpush1.msra.mxu0 %v765
    %789 = vmatprep.subr.mxu0 0.0
    %790 = vmatpush1.msra.mxu0 %v764
    %791 = vmatprep.subr.mxu0 0.0
    %792 = vmatpush1.msra.mxu0 %v763
    %793 = vmatprep.subr.mxu0 0.0
    %794 = vmatpush1.msra.mxu0 %v762
    %795 = vmatprep.subr.mxu0 0.0
    %796 = vmatpush1.msra.mxu0 %v761
    %797 = vmatprep.subr.mxu0 0.0
    %798 = vmatpush1.msra.mxu0 %v760
    %799 = vmatprep.subr.mxu0 0.0
    %800 = vmatpush1.msra.mxu0 %v759
    %801 = vmatprep.subr.mxu0 0.0
    %802 = vmatpush1.msra.mxu0 %v758
    %803 = vmatprep.subr.mxu0 0.0
    %804 = vmatpush1.msra.mxu0 %v757
    %805 = vmatprep.subr.mxu0 0.0
    %806 = vmatpush2.msra.mxu0 0.0
    %807 = vmatprep.subr.mxu0 0.0
    %808 = vmatpush2.msra.mxu0 0.0
    %809 = vmatprep.subr.mxu0 0.0
    %810 = vmatpush2.msra.mxu0 0.0
    %811 = vmatprep.subr.mxu0 0.0
    %812 = vmatpush2.msra.mxu0 0.0
    %813 = vmatprep.subr.mxu0 0.0
    %814 = vmatpush2.msra.mxu0 0.0
    %815 = vmatprep.subr.mxu0 0.0
    %816 = vmatpush2.msra.mxu0 0.0
    %817 = vmatprep.subr.mxu0 0.0
    %818 = vmatpush2.msra.mxu0 0.0
    %819 = vmatprep.subr.mxu0 0.0
    %820 = vmatpush2.msra.mxu0 0.0
    %821 = vmatprep.subr.mxu0 0.0
    %822 = vmatpush2.msra.mxu0 0.0
    %823 = vmatprep.subr.mxu0 0.0
    %824 = vmatpush2.msra.mxu0 0.0
    %825 = vmatprep.subr.mxu0 0.0
    %826 = vmatpush2.msra.mxu0 0.0
    %827 = vmatprep.subr.mxu0 0.0
    %828 = vmatpush2.msra.mxu0 0.0
    %829 = vmatprep.subr.mxu0 0.0
    %830 = vmatpush2.msra.mxu0 0.0
    %831 = vmatprep.subr.mxu0 0.0
    %832 = vmatpush2.msra.mxu0 0.0
    %833 = vmatprep.subr.mxu0 0.0
    %834 = vmatpush2.msra.mxu0 0.0
    %835 = vmatprep.subr.mxu0 0.0
    %836 = vmatpush2.msra.mxu0 0.0
    %837 = vmatprep.mubr.f32.mxu0 0.0
    %838 = vmatmul.mubr.f32.gmra.mxu0 %v149
    %v839 = vpop.f32.mrf.mxu0
    %v840 = vadd.f32 0.0, %v839
    %v841 = vpop.f32.mrf.mxu0
    %842 = vdwg.mxu0
    %v843 = vmul.f32 %v840, %v197
    %s844 = scalar_lea.vmem [#allocation11], 8
    %845 = vst [vmem:[%s844] sm:$0xff] %v843
    %s846 = scalar_lea.vmem [#allocation9], 256
    %v847 = vld [vmem:[%s846] sm:$0xff]
    %v848 = vld [vmem:[%s846 + $0x8] sm:$0xff]
    %v849 = vld [vmem:[%s846 + $0x10] sm:$0xff]
    %v850 = vld [vmem:[%s846 + $0x18] sm:$0xff]
    %v851 = vld [vmem:[%s846 + $0x20] sm:$0xff]
    %v852 = vld [vmem:[%s846 + $0x28] sm:$0xff]
    %v853 = vld [vmem:[%s846 + $0x30] sm:$0xff]
    %v854 = vld [vmem:[%s846 + $0x38] sm:$0xff]
    %v855 = vld [vmem:[%s846 + $0x40] sm:$0xff]
    %v856 = vld [vmem:[%s846 + $0x48] sm:$0xff]
    %v857 = vld [vmem:[%s846 + $0x50] sm:$0xff]
    %v858 = vld [vmem:[%s846 + $0x58] sm:$0xff]
    %v859 = vld [vmem:[%s846 + $0x60] sm:$0xff]
    %v860 = vld [vmem:[%s846 + $0x68] sm:$0xff]
    %v861 = vld [vmem:[%s846 + $0x70] sm:$0xff]
    %v862 = vld [vmem:[%s846 + $0x78] sm:$0xff]
    %863 = vmatprep.subr.mxu0 0.0
    %864 = vmatpush1.msra.mxu0 %v297
    %865 = vmatprep.subr.mxu0 0.0
    %866 = vmatpush1.msra.mxu0 %v296
    %867 = vmatprep.subr.mxu0 0.0
    %868 = vmatpush1.msra.mxu0 %v295
    %869 = vmatprep.subr.mxu0 0.0
    %870 = vmatpush1.msra.mxu0 %v294
    %871 = vmatprep.subr.mxu0 0.0
    %872 = vmatpush1.msra.mxu0 %v293
    %873 = vmatprep.subr.mxu0 0.0
    %874 = vmatpush1.msra.mxu0 %v292
    %875 = vmatprep.subr.mxu0 0.0
    %876 = vmatpush1.msra.mxu0 %v291
    %877 = vmatprep.subr.mxu0 0.0
    %878 = vmatpush1.msra.mxu0 %v290
    %879 = vmatprep.subr.mxu0 0.0
    %880 = vmatpush1.msra.mxu0 %v289
    %881 = vmatprep.subr.mxu0 0.0
    %882 = vmatpush1.msra.mxu0 %v288
    %883 = vmatprep.subr.mxu0 0.0
    %884 = vmatpush1.msra.mxu0 %v287
    %885 = vmatprep.subr.mxu0 0.0
    %886 = vmatpush1.msra.mxu0 %v286
    %887 = vmatprep.subr.mxu0 0.0
    %888 = vmatpush1.msra.mxu0 %v285
    %889 = vmatprep.subr.mxu0 0.0
    %890 = vmatpush1.msra.mxu0 %v284
    %891 = vmatprep.subr.mxu0 0.0
    %892 = vmatpush1.msra.mxu0 %v283
    %893 = vmatprep.subr.mxu0 0.0
    %894 = vmatpush1.msra.mxu0 %v282
    %895 = vmatprep.subr.mxu0 0.0
    %896 = vmatpush2.msra.mxu0 0.0
    %897 = vmatprep.subr.mxu0 0.0
    %898 = vmatpush2.msra.mxu0 0.0
    %899 = vmatprep.subr.mxu0 0.0
    %900 = vmatpush2.msra.mxu0 0.0
    %901 = vmatprep.subr.mxu0 0.0
    %902 = vmatpush2.msra.mxu0 0.0
    %903 = vmatprep.subr.mxu0 0.0
    %904 = vmatpush2.msra.mxu0 0.0
    %905 = vmatprep.subr.mxu0 0.0
    %906 = vmatpush2.msra.mxu0 0.0
    %907 = vmatprep.subr.mxu0 0.0
    %908 = vmatpush2.msra.mxu0 0.0
    %909 = vmatprep.subr.mxu0 0.0
    %910 = vmatpush2.msra.mxu0 0.0
    %911 = vmatprep.subr.mxu0 0.0
    %912 = vmatpush2.msra.mxu0 0.0
    %913 = vmatprep.subr.mxu0 0.0
    %914 = vmatpush2.msra.mxu0 0.0
    %915 = vmatprep.subr.mxu0 0.0
    %916 = vmatpush2.msra.mxu0 0.0
    %917 = vmatprep.subr.mxu0 0.0
    %918 = vmatpush2.msra.mxu0 0.0
    %919 = vmatprep.subr.mxu0 0.0
    %920 = vmatpush2.msra.mxu0 0.0
    %921 = vmatprep.subr.mxu0 0.0
    %922 = vmatpush2.msra.mxu0 0.0
    %923 = vmatprep.subr.mxu0 0.0
    %924 = vmatpush2.msra.mxu0 0.0
    %925 = vmatprep.subr.mxu0 0.0
    %926 = vmatpush2.msra.mxu0 0.0
    %927 = vmatprep.mubr.f32.mxu0 0.0
    %928 = vmatmul.mubr.f32.gmra.mxu0 %v847
    %v929 = vpop.f32.mrf.mxu0
    %v930 = vadd.f32 0.0, %v929
    %v931 = vpop.f32.mrf.mxu0
    %932 = vmatprep.mubr.f32.mxu0 0.0
    %933 = vmatmul.mubr.f32.gmra.mxu0 %v848
    %v934 = vpop.f32.mrf.mxu0
    %v935 = vadd.f32 0.0, %v934
    %v936 = vpop.f32.mrf.mxu0
    %937 = vmatprep.mubr.f32.mxu0 0.0
    %938 = vmatmul.mubr.f32.gmra.mxu0 %v849
    %v939 = vpop.f32.mrf.mxu0
    %v940 = vadd.f32 0.0, %v939
    %v941 = vpop.f32.mrf.mxu0
    %942 = vmatprep.mubr.f32.mxu0 0.0
    %943 = vmatmul.mubr.f32.gmra.mxu0 %v850
    %v944 = vpop.f32.mrf.mxu0
    %v945 = vadd.f32 0.0, %v944
    %v946 = vpop.f32.mrf.mxu0
    %947 = vmatprep.mubr.f32.mxu0 0.0
    %948 = vmatmul.mubr.f32.gmra.mxu0 %v851
    %v949 = vpop.f32.mrf.mxu0
    %v950 = vadd.f32 0.0, %v949
    %v951 = vpop.f32.mrf.mxu0
    %952 = vmatprep.mubr.f32.mxu0 0.0
    %953 = vmatmul.mubr.f32.gmra.mxu0 %v852
    %v954 = vpop.f32.mrf.mxu0
    %v955 = vadd.f32 0.0, %v954
    %v956 = vpop.f32.mrf.mxu0
    %957 = vmatprep.mubr.f32.mxu0 0.0
    %958 = vmatmul.mubr.f32.gmra.mxu0 %v853
    %v959 = vpop.f32.mrf.mxu0
    %v960 = vadd.f32 0.0, %v959
    %v961 = vpop.f32.mrf.mxu0
    %962 = vmatprep.mubr.f32.mxu0 0.0
    %963 = vmatmul.mubr.f32.gmra.mxu0 %v854
    %v964 = vpop.f32.mrf.mxu0
    %v965 = vadd.f32 0.0, %v964
    %v966 = vpop.f32.mrf.mxu0
    %967 = vmatprep.mubr.f32.mxu0 0.0
    %968 = vmatmul.mubr.f32.gmra.mxu0 %v855
    %v969 = vpop.f32.mrf.mxu0
    %v970 = vadd.f32 0.0, %v969
    %v971 = vpop.f32.mrf.mxu0
    %972 = vmatprep.mubr.f32.mxu0 0.0
    %973 = vmatmul.mubr.f32.gmra.mxu0 %v856
    %v974 = vpop.f32.mrf.mxu0
    %v975 = vadd.f32 0.0, %v974
    %v976 = vpop.f32.mrf.mxu0
    %977 = vmatprep.mubr.f32.mxu0 0.0
    %978 = vmatmul.mubr.f32.gmra.mxu0 %v857
    %v979 = vpop.f32.mrf.mxu0
    %v980 = vadd.f32 0.0, %v979
    %v981 = vpop.f32.mrf.mxu0
    %982 = vmatprep.mubr.f32.mxu0 0.0
    %983 = vmatmul.mubr.f32.gmra.mxu0 %v858
    %v984 = vpop.f32.mrf.mxu0
    %v985 = vadd.f32 0.0, %v984
    %v986 = vpop.f32.mrf.mxu0
    %987 = vmatprep.mubr.f32.mxu0 0.0
    %988 = vmatmul.mubr.f32.gmra.mxu0 %v859
    %v989 = vpop.f32.mrf.mxu0
    %v990 = vadd.f32 0.0, %v989
    %v991 = vpop.f32.mrf.mxu0
    %992 = vmatprep.mubr.f32.mxu0 0.0
    %993 = vmatmul.mubr.f32.gmra.mxu0 %v860
    %v994 = vpop.f32.mrf.mxu0
    %v995 = vadd.f32 0.0, %v994
    %v996 = vpop.f32.mrf.mxu0
    %997 = vmatprep.mubr.f32.mxu0 0.0
    %998 = vmatmul.mubr.f32.gmra.mxu0 %v861
    %v999 = vpop.f32.mrf.mxu0
    %v1000 = vadd.f32 0.0, %v999
    %v1001 = vpop.f32.mrf.mxu0
    %1002 = vmatprep.mubr.f32.mxu0 0.0
    %1003 = vmatmul.mubr.f32.gmra.mxu0 %v862
    %v1004 = vpop.f32.mrf.mxu0
    %v1005 = vadd.f32 0.0, %v1004
    %v1006 = vpop.f32.mrf.mxu0
    %1007 = vdwg.mxu0
    %v1008 = vmul.f32 %v930, %v330
    %v1009 = vmul.f32 %v935, %v331
    %v1010 = vmul.f32 %v940, %v332
    %v1011 = vmul.f32 %v945, %v333
    %v1012 = vmul.f32 %v950, %v334
    %v1013 = vmul.f32 %v955, %v335
    %v1014 = vmul.f32 %v960, %v336
    %v1015 = vmul.f32 %v965, %v337
    %v1016 = vmul.f32 %v970, %v338
    %v1017 = vmul.f32 %v975, %v339
    %v1018 = vmul.f32 %v980, %v340
    %v1019 = vmul.f32 %v985, %v341
    %v1020 = vmul.f32 %v990, %v342
    %v1021 = vmul.f32 %v995, %v343
    %v1022 = vmul.f32 %v1000, %v344
    %v1023 = vmul.f32 %v1005, %v345
    %1024 = vmatprep.subr.mxu0 0.0
    %1025 = vmatpush1.msra.mxu0 %v1023
    %1026 = vmatprep.subr.mxu0 0.0
    %1027 = vmatpush1.msra.mxu0 %v1022
    %1028 = vmatprep.subr.mxu0 0.0
    %1029 = vmatpush1.msra.mxu0 %v1021
    %1030 = vmatprep.subr.mxu0 0.0
    %1031 = vmatpush1.msra.mxu0 %v1020
    %1032 = vmatprep.subr.mxu0 0.0
    %1033 = vmatpush1.msra.mxu0 %v1019
    %1034 = vmatprep.subr.mxu0 0.0
    %1035 = vmatpush1.msra.mxu0 %v1018
    %1036 = vmatprep.subr.mxu0 0.0
    %1037 = vmatpush1.msra.mxu0 %v1017
    %1038 = vmatprep.subr.mxu0 0.0
    %1039 = vmatpush1.msra.mxu0 %v1016
    %1040 = vmatprep.subr.mxu0 0.0
    %1041 = vmatpush1.msra.mxu0 %v1015
    %1042 = vmatprep.subr.mxu0 0.0
    %1043 = vmatpush1.msra.mxu0 %v1014
    %1044 = vmatprep.subr.mxu0 0.0
    %1045 = vmatpush1.msra.mxu0 %v1013
    %1046 = vmatprep.subr.mxu0 0.0
    %1047 = vmatpush1.msra.mxu0 %v1012
    %1048 = vmatprep.subr.mxu0 0.0
    %1049 = vmatpush1.msra.mxu0 %v1011
    %1050 = vmatprep.subr.mxu0 0.0
    %1051 = vmatpush1.msra.mxu0 %v1010
    %1052 = vmatprep.subr.mxu0 0.0
    %1053 = vmatpush1.msra.mxu0 %v1009
    %1054 = vmatprep.subr.mxu0 0.0
    %1055 = vmatpush1.msra.mxu0 %v1008
    %1056 = vmatprep.subr.mxu0 0.0
    %1057 = vmatpush2.msra.mxu0 0.0
    %1058 = vmatprep.subr.mxu0 0.0
    %1059 = vmatpush2.msra.mxu0 0.0
    %1060 = vmatprep.subr.mxu0 0.0
    %1061 = vmatpush2.msra.mxu0 0.0
    %1062 = vmatprep.subr.mxu0 0.0
    %1063 = vmatpush2.msra.mxu0 0.0
    %1064 = vmatprep.subr.mxu0 0.0
    %1065 = vmatpush2.msra.mxu0 0.0
    %1066 = vmatprep.subr.mxu0 0.0
    %1067 = vmatpush2.msra.mxu0 0.0
    %1068 = vmatprep.subr.mxu0 0.0
    %1069 = vmatpush2.msra.mxu0 0.0
    %1070 = vmatprep.subr.mxu0 0.0
    %1071 = vmatpush2.msra.mxu0 0.0
    %1072 = vmatprep.subr.mxu0 0.0
    %1073 = vmatpush2.msra.mxu0 0.0
    %1074 = vmatprep.subr.mxu0 0.0
    %1075 = vmatpush2.msra.mxu0 0.0
    %1076 = vmatprep.subr.mxu0 0.0
    %1077 = vmatpush2.msra.mxu0 0.0
    %1078 = vmatprep.subr.mxu0 0.0
    %1079 = vmatpush2.msra.mxu0 0.0
    %1080 = vmatprep.subr.mxu0 0.0
    %1081 = vmatpush2.msra.mxu0 0.0
    %1082 = vmatprep.subr.mxu0 0.0
    %1083 = vmatpush2.msra.mxu0 0.0
    %1084 = vmatprep.subr.mxu0 0.0
    %1085 = vmatpush2.msra.mxu0 0.0
    %1086 = vmatprep.subr.mxu0 0.0
    %1087 = vmatpush2.msra.mxu0 0.0
    %1088 = vmatprep.mubr.f32.mxu0 0.0
    %1089 = vmatmul.mubr.f32.gmra.mxu0 %v149
    %v1090 = vpop.f32.mrf.mxu0
    %v1091 = vadd.f32 0.0, %v1090
    %v1092 = vpop.f32.mrf.mxu0
    %1093 = vdwg.mxu0
    %v1094 = vmul.f32 %v1091, %v197
    %s1095 = scalar_lea.vmem [#allocation11], 16
    %1096 = vst [vmem:[%s1095] sm:$0xff] %v1094
    // Predicated region
    $region34: #{tpu_custom_call.1} parent=1 // pred_check
      _
    $region35: #{tpu_custom_call.1} parent=1 // pred_check_branch
      %1098 = sbr.rel (0) target = $region37
    $region36: #{tpu_custom_call.1} parent=1 // pred_region
      %s1100 = ssub.s32 384, 384
      %1101 = vsyncadd [#allocation4], %s1100
      %s1102 = sshll.u32 [#allocation11], 4
      %s1103 = int_to_ptr.vmem [resolvable:$true] %s1102
      %1108 = dma.vmem_to_hbm [thread:$0]  %s1103, 384, %s4, [#allocation4], 128, 128, 8
    $region37: #{tpu_custom_call.1} parent=1 // pred_fallthru
      _
    // Predicated region
    $region38: #{tpu_custom_call.1} parent=1 // pred_check
      _
    $region39: #{tpu_custom_call.1} parent=1 // pred_check_branch
      %1110 = sbr.rel (0) target = $region41
    $region40: #{tpu_custom_call.1} parent=1 // pred_region
      %1111 = dma.done [#allocation4], 384
    $region41: #{tpu_custom_call.1} parent=1 // pred_fallthru
      _
    %1112 = vsyncpa [#allocation3], 1
    %1113 = vsyncpa [#allocation10], 1
    %1114 = vsyncpa [#allocation4], 1
    %1115 = vsyncpa [#allocation5], 1
    %1116 = vsyncpa [#allocation6], 1

</llo_original>
